<compile_context>
chip_gen: v6e
topology: v6e:2x2x1
jax: 0.10.0
libtpu: 0.0.40
codegen_flags: <defaults>
</compile_context>

<pallas_src>
import functools

import jax
import jax.numpy as jnp
from jax.experimental import pallas as pl
from jax.experimental.pallas import tpu as pltpu

LANE = 128


def _round_up(x, m):
    return ((x + m - 1) // m) * m


def _pad2d(a, rows, cols):
    return jnp.pad(a, ((0, rows - a.shape[0]), (0, cols - a.shape[1])))


# ----------------------------- kernels -----------------------------

def _sage_lstm_kernel(xself_ref, xnbr_ref, mask_ref, wg_ref, bg_ref,
                      wsn_ref, bo_ref, out_ref, *, d, relu):
    """One SAGEConv('lstm') layer for one tile of destination nodes.

    xself_ref: [tile, Fp]        bf16  node's own (padded) features
    xnbr_ref:  [D, tile, Fp]     bf16  gathered neighbor features per step
    mask_ref:  [tile, D]         f32   1.0 while step < degree (trailing pad)
    wg_ref:    [2*Fp, 4*Fp]      bf16  [[W_ih^T],[W_hh^T]], gates i|f|g|o on lanes
    bg_ref:    [1, 4*Fp]         f32   b_ih + b_hh, per-gate 128-lane blocks
    wsn_ref:   [2*Fp, Foutp]     bf16  [[W_self^T],[W_neigh^T]]
    bo_ref:    [1, Foutp]        f32
    out_ref:   [tile, Foutp]
    """
    tile, finp = xself_ref.shape
    h = jnp.zeros((tile, finp), jnp.float32)
    c = jnp.zeros((tile, finp), jnp.float32)

    # Small static trip count -> unrolled.
    # TODO(synk): switch to lax.fori_loop(..., unroll=True) if MAX_DEG grows
    # beyond ~8 to bound live ranges / code size.
    for t in range(d):
        xt = xnbr_ref[t]                                       # [tile, Fp] bf16
        xh = jnp.concatenate([xt, h.astype(jnp.bfloat16)], axis=1)
        gates = jnp.dot(xh, wg_ref[...],
                        preferred_element_type=jnp.float32) + bg_ref[...]
        i_g = jax.nn.sigmoid(gates[:, 0 * finp:1 * finp])
        f_g = jax.nn.sigmoid(gates[:, 1 * finp:2 * finp])
        g_g = jnp.tanh(gates[:, 2 * finp:3 * finp])
        o_g = jax.nn.sigmoid(gates[:, 3 * finp:4 * finp])
        c_new = f_g * c + i_g * g_g
        h_new = o_g * jnp.tanh(c_new)
        m = mask_ref[:, t:t + 1]                               # [tile, 1]
        c = c + m * (c_new - c)                                # masked-step freeze
        h = h + m * (h_new - h)

    xh_out = jnp.concatenate([xself_ref[...], h.astype(jnp.bfloat16)], axis=1)
    out = jnp.dot(xh_out, wsn_ref[...],
                  preferred_element_type=jnp.float32) + bo_ref[...]
    if relu:
        out = jnp.maximum(out, 0.0)
    out_ref[...] = out.astype(out_ref.dtype)


def _readout_heads_kernel(h_ref, wh_ref, bh_ref, out_ref, *, n_real, rep_p):
    """mean over the first n_real node rows, then mu/sigma linear heads."""
    np_, _ = h_ref.shape
    row = jax.lax.broadcasted_iota(jnp.int32, (np_, 1), 0)
    valid = (row < n_real).astype(jnp.float32)                 # mask padded rows
    hmean = jnp.sum(h_ref[...] * valid, axis=0, keepdims=True) * (1.0 / n_real)
    z = jnp.dot(hmean.astype(jnp.bfloat16), wh_ref[...],
                preferred_element_type=jnp.float32) + bh_ref[...]   # [1, 2*rep_p]
    out_ref[0:1, :] = z[:, :rep_p]                             # mu
    out_ref[1:2, :] = z[:, rep_p:2 * rep_p]                    # sigma


# ----------------------------- wrappers (glue) -----------------------------

def _prep_layer_params(p, finp, foutp):
    """Torch-layout SAGE/LSTM params -> fused, 128-padded, bf16 kernel layout."""
    _, fin = p["w_self"].shape

    def gate_blocks(w):  # w: [4*fin, fin], PyTorch gate order i, f, g, o
        wt = jnp.transpose(w.reshape(4, fin, fin), (0, 2, 1))  # [4, fin_in, fin_gate]
        return jnp.concatenate([_pad2d(wt[g], finp, finp) for g in range(4)],
                               axis=1)                         # [finp, 4*finp]

    wg = jnp.concatenate([gate_blocks(p["w_ih"]), gate_blocks(p["w_hh"])],
                         axis=0).astype(jnp.bfloat16)          # [2*finp, 4*finp]
    b = (p["b_ih"] + p["b_hh"]).reshape(4, fin)                # combined bias
    bg = jnp.concatenate([_pad2d(b[g:g + 1], 1, finp) for g in range(4)],
                         axis=1).astype(jnp.float32)           # [1, 4*finp]
    wsn = jnp.concatenate([_pad2d(p["w_self"].T, finp, foutp),
                           _pad2d(p["w_neigh"].T, finp, foutp)],
                          axis=0).astype(jnp.bfloat16)         # [2*finp, foutp]
    bo = _pad2d(p["bias"][None, :], 1, foutp).astype(jnp.float32)
    return wg, bg, wsn, bo


def _sage_layer_call(x, xnbr, mask, wg, bg, wsn, bo, *, relu, out_dtype,
                     tile_n, vmem_limit):
    np_, finp = x.shape
    d = xnbr.shape[0]
    foutp = wsn.shape[1]
    kernel = functools.partial(_sage_lstm_kernel, d=d, relu=relu)
    return pl.pallas_call(
        kernel,
        out_shape=jax.ShapeDtypeStruct((np_, foutp), out_dtype),
        grid=(np_ // tile_n,),
        in_specs=[
            pl.BlockSpec((tile_n, finp), lambda i: (i, 0)),          # x_self
            pl.BlockSpec((d, tile_n, finp), lambda i: (0, i, 0)),    # x_nbr
            pl.BlockSpec((tile_n, d), lambda i: (i, 0)),             # step mask
            pl.BlockSpec((2 * finp, 4 * finp), lambda i: (0, 0)),    # gate W
            pl.BlockSpec((1, 4 * finp), lambda i: (0, 0)),           # gate b
            pl.BlockSpec((2 * finp, foutp), lambda i: (0, 0)),       # self|neigh W
            pl.BlockSpec((1, foutp), lambda i: (0, 0)),              # out bias
        ],
        out_specs=pl.BlockSpec((tile_n, foutp), lambda i: (i, 0)),
        compiler_params=pltpu.CompilerParams(
            dimension_semantics=("parallel",),
            vmem_limit_bytes=vmem_limit),
    )(x, xnbr, mask, wg, bg, wsn, bo)


def gcn_encoder_forward(nbr_idx, nbr_mask, in_feat, params, *, tile_n=256):
    """nbr_idx: [N, D] int32, nbr_mask: [N, D] f32 (trailing padding), in_feat: [N, F0]."""
    n, f0 = in_feat.shape
    d = nbr_idx.shape[1]
    rep = params["heads"]["w_mu"].shape[0]
    f1 = params["gcn1"]["w_self"].shape[0]
    f2 = params["gcn2"]["w_self"].shape[0]

    f0p, f1p, f2p, rep_p = (_round_up(v, LANE) for v in (f0, f1, f2, rep))
    tile_n = _round_up(max(8, min(tile_n, _round_up(n, 8))), 16)
    np_ = _round_up(n, tile_n)
    vmem_limit = 48 * 1024 * 1024   # > 16/32 MiB scoped defaults, < v7x 64 MiB

    # --- glue: pad nodes + lanes; pack weights; index-gather neighbor rows ---
    x0 = _pad2d(in_feat, np_, f0p).astype(jnp.bfloat16)              # [Np, F0p]
    idx = jnp.pad(nbr_idx, ((0, np_ - n), (0, 0))).astype(jnp.int32)  # [Np, D]
    mask = jnp.pad(nbr_mask, ((0, np_ - n), (0, 0))).astype(jnp.float32)

    l1 = _prep_layer_params(params["gcn1"], f0p, f1p)
    l2 = _prep_layer_params(params["gcn2"], f1p, f2p)
    ph = params["heads"]
    wh = jnp.concatenate([_pad2d(ph["w_mu"].T, f2p, rep_p),
                          _pad2d(ph["w_sigma"].T, f2p, rep_p)],
                         axis=1).astype(jnp.bfloat16)                # [F2p, 2*Rp]
    bh = jnp.concatenate([_pad2d(ph["b_mu"][None, :], 1, rep_p),
                          _pad2d(ph["b_sigma"][None, :], 1, rep_p)],
                         axis=1).astype(jnp.float32)                 # [1, 2*Rp]

    # Layer 1: index gather of neighbor feature rows (O(D*N*F0), no one-hot).
    xnbr1 = x0[idx.T]                                                # [D, Np, F0p]
    h1 = _sage_layer_call(x0, xnbr1, mask, *l1, relu=True,
                          out_dtype=jnp.bfloat16, tile_n=tile_n,
                          vmem_limit=vmem_limit)                     # [Np, F1p]
    # Layer 2: gather from layer-1 output (one cheap O(N*F1) HBM round trip).
    xnbr2 = h1[idx.T]                                                # [D, Np, F1p]
    h2 = _sage_layer_call(h1, xnbr2, mask, *l2, relu=False,
                          out_dtype=jnp.float32, tile_n=tile_n,
                          vmem_limit=vmem_limit)                     # [Np, F2p]

    out = pl.pallas_call(
        functools.partial(_readout_heads_kernel, n_real=n, rep_p=rep_p),
        out_shape=jax.ShapeDtypeStruct((2, rep_p), jnp.float32),
        grid=(1,),
        in_specs=[pl.BlockSpec((np_, f2p), lambda i: (0, 0)),
                  pl.BlockSpec((f2p, 2 * rep_p), lambda i: (0, 0)),
                  pl.BlockSpec((1, 2 * rep_p), lambda i: (0, 0))],
        out_specs=pl.BlockSpec((2, rep_p), lambda i: (0, 0)),
        compiler_params=pltpu.CompilerParams(
            dimension_semantics=("arbitrary",),
            vmem_limit_bytes=vmem_limit),
    )(h2, wh, bh)
    return out[0:1, :rep], out[1:2, :rep]


# ----------------------------- param init -----------------------------

def init_sage_params(key, fin, fout):
    ks = jax.random.split(key, 7)
    s = 0.1
    return {
        "w_ih": s * jax.random.normal(ks[0], (4 * fin, fin), jnp.float32),
        "w_hh": s * jax.random.normal(ks[1], (4 * fin, fin), jnp.float32),
        "b_ih": s * jax.random.normal(ks[2], (4 * fin,), jnp.float32),
        "b_hh": s * jax.random.normal(ks[3], (4 * fin,), jnp.float32),
        "w_self": s * jax.random.normal(ks[4], (fout, fin), jnp.float32),
        "w_neigh": s * jax.random.normal(ks[5], (fout, fin), jnp.float32),
        "bias": s * jax.random.normal(ks[6], (fout,), jnp.float32),
    }


def init_head_params(key, hidden, rep):
    ks = jax.random.split(key, 4)
    s = 0.1
    return {
        "w_mu": s * jax.random.normal(ks[0], (rep, hidden), jnp.float32),
        "b_mu": s * jax.random.normal(ks[1], (rep,), jnp.float32),
        "w_sigma": s * jax.random.normal(ks[2], (rep, hidden), jnp.float32),
        "b_sigma": s * jax.random.normal(ks[3], (rep,), jnp.float32),
    }


# ----------------------------- main -----------------------------

if __name__ == "__main__":
    N = 24           # nodes in the (single) graph
    MAX_DEG = 4      # padded max in-degree
    INPUT_SIZE = 16
    FEAT_SIZE = 32
    HIDDEN_SIZE = 32
    REP_SIZE = 8
    TILE_N = 16      # -> 2 node tiles after padding (exercises the grid)

    key = jax.random.PRNGKey(0)
    k_feat, k_g1, k_g2, k_h = jax.random.split(key, 4)

    # deterministic small graph: node i's neighbors are (i+1), (i+2), (i-1) mod N,
    # padded to MAX_DEG with index 0 + mask 0 (trailing padding).
    nbr_idx = jnp.stack(
        [jnp.array([(i + 1) % N, (i + 2) % N, (i - 1) % N, 0], dtype=jnp.int32)
         for i in range(N)], axis=0)                           # [N, MAX_DEG]
    nbr_mask = jnp.tile(jnp.array([1.0, 1.0, 1.0, 0.0], jnp.float32), (N, 1))

    in_feat = jax.random.normal(k_feat, (N, INPUT_SIZE), jnp.float32)

    params = {
        "gcn1": init_sage_params(k_g1, INPUT_SIZE, FEAT_SIZE),
        "gcn2": init_sage_params(k_g2, FEAT_SIZE, HIDDEN_SIZE),
        "heads": init_head_params(k_h, HIDDEN_SIZE, REP_SIZE),
    }

    mu, sigma = gcn_encoder_forward(nbr_idx, nbr_mask, in_feat, params,
                                    tile_n=TILE_N)
    jax.block_until_ready((mu, sigma))
    assert mu.shape == (1, REP_SIZE) and sigma.shape == (1, REP_SIZE)
    assert bool(jnp.all(jnp.isfinite(mu))) and bool(jnp.all(jnp.isfinite(sigma)))
    print("KERNEL_OK")
</pallas_src>

<mosaic_0001>
module attributes {stable_mosaic.version = 11 : i64} {
  func.func @_sage_lstm_kernel(%arg0: i32, %arg1: memref<16x128xbf16, #tpu.memory_space<vmem>>, %arg2: memref<4x16x128xbf16, #tpu.memory_space<vmem>>, %arg3: memref<16x4xf32, #tpu.memory_space<vmem>>, %arg4: memref<256x512xbf16, #tpu.memory_space<vmem>>, %arg5: memref<1x512xf32, #tpu.memory_space<vmem>>, %arg6: memref<256x128xbf16, #tpu.memory_space<vmem>>, %arg7: memref<1x128xf32, #tpu.memory_space<vmem>>, %arg8: memref<16x128xbf16, #tpu.memory_space<vmem>>) attributes {dimension_semantics = [#tpu.dimension_semantics<parallel>], iteration_bounds = array<i64: 2>, scalar_prefetch = 0 : i64, scratch_operands = 0 : i64, tpu.core_type = #tpu.core_type<tc>, window_params = [{transform_indices = @transform_0, window_bounds = array<i64: 16, 128>}, {transform_indices = @transform_1, window_bounds = array<i64: 4, 16, 128>}, {transform_indices = @transform_2, window_bounds = array<i64: 16, 4>}, {pipeline_mode = #tpu.pipeline_mode<synchronous>, transform_indices = @transform_3, window_bounds = array<i64: 256, 512>}, {pipeline_mode = #tpu.pipeline_mode<synchronous>, transform_indices = @transform_4, window_bounds = array<i64: 1, 512>}, {pipeline_mode = #tpu.pipeline_mode<synchronous>, transform_indices = @transform_5, window_bounds = array<i64: 256, 128>}, {pipeline_mode = #tpu.pipeline_mode<synchronous>, transform_indices = @transform_6, window_bounds = array<i64: 1, 128>}, {transform_indices = @transform_7, window_bounds = array<i64: 16, 128>}]} {
    %cst = arith.constant 0.000000e+00 : f32
    %0 = vector.broadcast %cst : f32 to vector<16x128xf32>
    %cst_0 = arith.constant 0.000000e+00 : f32
    %1 = vector.broadcast %cst_0 : f32 to vector<16x128xf32>
    %c0 = arith.constant 0 : index
    %c0_1 = arith.constant 0 : index
    %c0_2 = arith.constant 0 : index
    %2 = vector.load %arg2[%c0, %c0_1, %c0_2] : memref<4x16x128xbf16, #tpu.memory_space<vmem>>, vector<1x16x128xbf16>
    %3 = vector.shape_cast %2 : vector<1x16x128xbf16> to vector<16x128xbf16>
    %4 = arith.truncf %0 : vector<16x128xf32> to vector<16x128xbf16>
    %5 = tpu.concatenate %3, %4 in 1 : vector<16x128xbf16>, vector<16x128xbf16> -> vector<16x256xbf16>
    %c0_3 = arith.constant 0 : index
    %c0_4 = arith.constant 0 : index
    %6 = vector.load %arg4[%c0_3, %c0_4] : memref<256x512xbf16, #tpu.memory_space<vmem>>, vector<256x512xbf16>
    %cst_5 = arith.constant dense<0.000000e+00> : vector<16x512xf32>
    %7 = tpu.matmul %5, %6, %cst_5 {dimension_numbers = #tpu.dot_dimension_numbers<[1], [0], [0], [1], [0, 0, 1, 1], [], []>} : vector<16x256xbf16>, vector<256x512xbf16>, vector<16x512xf32> -> vector<16x512xf32>
    %c0_6 = arith.constant 0 : index
    %c0_7 = arith.constant 0 : index
    %8 = vector.load %arg5[%c0_6, %c0_7] : memref<1x512xf32, #tpu.memory_space<vmem>>, vector<1x512xf32>
    %9 = vector.broadcast %8 : vector<1x512xf32> to vector<16x512xf32>
    %10 = arith.addf %7, %9 : vector<16x512xf32>
    %11 = vector.extract_strided_slice %10 {offsets = [0, 0], sizes = [16, 128], strides = [1, 1]} : vector<16x512xf32> to vector<16x128xf32>
    %12 = arith.negf %11 : vector<16x128xf32>
    %13 = math.exp %12 : vector<16x128xf32>
    %cst_8 = arith.constant 1.000000e+00 : f32
    %14 = vector.broadcast %cst_8 : f32 to vector<16x128xf32>
    %15 = arith.addf %14, %13 : vector<16x128xf32>
    %16 = arith.divf %14, %15 : vector<16x128xf32>
    %17 = vector.extract_strided_slice %10 {offsets = [0, 128], sizes = [16, 128], strides = [1, 1]} : vector<16x512xf32> to vector<16x128xf32>
    %18 = arith.negf %17 : vector<16x128xf32>
    %19 = math.exp %18 : vector<16x128xf32>
    %cst_9 = arith.constant 1.000000e+00 : f32
    %20 = vector.broadcast %cst_9 : f32 to vector<16x128xf32>
    %21 = arith.addf %20, %19 : vector<16x128xf32>
    %22 = arith.divf %20, %21 : vector<16x128xf32>
    %23 = vector.extract_strided_slice %10 {offsets = [0, 256], sizes = [16, 128], strides = [1, 1]} : vector<16x512xf32> to vector<16x128xf32>
    %24 = math.tanh %23 : vector<16x128xf32>
    %25 = vector.extract_strided_slice %10 {offsets = [0, 384], sizes = [16, 128], strides = [1, 1]} : vector<16x512xf32> to vector<16x128xf32>
    %26 = arith.negf %25 : vector<16x128xf32>
    %27 = math.exp %26 : vector<16x128xf32>
    %cst_10 = arith.constant 1.000000e+00 : f32
    %28 = vector.broadcast %cst_10 : f32 to vector<16x128xf32>
    %29 = arith.addf %28, %27 : vector<16x128xf32>
    %30 = arith.divf %28, %29 : vector<16x128xf32>
    %31 = arith.mulf %22, %1 : vector<16x128xf32>
    %32 = arith.mulf %16, %24 : vector<16x128xf32>
    %33 = arith.addf %31, %32 : vector<16x128xf32>
    %34 = math.tanh %33 : vector<16x128xf32>
    %35 = arith.mulf %30, %34 : vector<16x128xf32>
    %c0_11 = arith.constant 0 : index
    %c0_12 = arith.constant 0 : index
    %36 = vector.load %arg3[%c0_11, %c0_12] : memref<16x4xf32, #tpu.memory_space<vmem>>, vector<16x1xf32>
    %37 = arith.subf %33, %1 : vector<16x128xf32>
    %38 = vector.broadcast %36 : vector<16x1xf32> to vector<16x128xf32>
    %39 = arith.mulf %38, %37 : vector<16x128xf32>
    %40 = arith.addf %1, %39 : vector<16x128xf32>
    %41 = arith.subf %35, %0 : vector<16x128xf32>
    %42 = vector.broadcast %36 : vector<16x1xf32> to vector<16x128xf32>
    %43 = arith.mulf %42, %41 : vector<16x128xf32>
    %44 = arith.addf %0, %43 : vector<16x128xf32>
    %c1 = arith.constant 1 : index
    %c0_13 = arith.constant 0 : index
    %c0_14 = arith.constant 0 : index
    %45 = vector.load %arg2[%c1, %c0_13, %c0_14] : memref<4x16x128xbf16, #tpu.memory_space<vmem>>, vector<1x16x128xbf16>
    %46 = vector.shape_cast %45 : vector<1x16x128xbf16> to vector<16x128xbf16>
    %47 = arith.truncf %44 : vector<16x128xf32> to vector<16x128xbf16>
    %48 = tpu.concatenate %46, %47 in 1 : vector<16x128xbf16>, vector<16x128xbf16> -> vector<16x256xbf16>
    %c0_15 = arith.constant 0 : index
    %c0_16 = arith.constant 0 : index
    %49 = vector.load %arg4[%c0_15, %c0_16] : memref<256x512xbf16, #tpu.memory_space<vmem>>, vector<256x512xbf16>
    %cst_17 = arith.constant dense<0.000000e+00> : vector<16x512xf32>
    %50 = tpu.matmul %48, %49, %cst_17 {dimension_numbers = #tpu.dot_dimension_numbers<[1], [0], [0], [1], [0, 0, 1, 1], [], []>} : vector<16x256xbf16>, vector<256x512xbf16>, vector<16x512xf32> -> vector<16x512xf32>
    %c0_18 = arith.constant 0 : index
    %c0_19 = arith.constant 0 : index
    %51 = vector.load %arg5[%c0_18, %c0_19] : memref<1x512xf32, #tpu.memory_space<vmem>>, vector<1x512xf32>
    %52 = vector.broadcast %51 : vector<1x512xf32> to vector<16x512xf32>
    %53 = arith.addf %50, %52 : vector<16x512xf32>
    %54 = vector.extract_strided_slice %53 {offsets = [0, 0], sizes = [16, 128], strides = [1, 1]} : vector<16x512xf32> to vector<16x128xf32>
    %55 = arith.negf %54 : vector<16x128xf32>
    %56 = math.exp %55 : vector<16x128xf32>
    %cst_20 = arith.constant 1.000000e+00 : f32
    %57 = vector.broadcast %cst_20 : f32 to vector<16x128xf32>
    %58 = arith.addf %57, %56 : vector<16x128xf32>
    %59 = arith.divf %57, %58 : vector<16x128xf32>
    %60 = vector.extract_strided_slice %53 {offsets = [0, 128], sizes = [16, 128], strides = [1, 1]} : vector<16x512xf32> to vector<16x128xf32>
    %61 = arith.negf %60 : vector<16x128xf32>
    %62 = math.exp %61 : vector<16x128xf32>
    %cst_21 = arith.constant 1.000000e+00 : f32
    %63 = vector.broadcast %cst_21 : f32 to vector<16x128xf32>
    %64 = arith.addf %63, %62 : vector<16x128xf32>
    %65 = arith.divf %63, %64 : vector<16x128xf32>
    %66 = vector.extract_strided_slice %53 {offsets = [0, 256], sizes = [16, 128], strides = [1, 1]} : vector<16x512xf32> to vector<16x128xf32>
    %67 = math.tanh %66 : vector<16x128xf32>
    %68 = vector.extract_strided_slice %53 {offsets = [0, 384], sizes = [16, 128], strides = [1, 1]} : vector<16x512xf32> to vector<16x128xf32>
    %69 = arith.negf %68 : vector<16x128xf32>
    %70 = math.exp %69 : vector<16x128xf32>
    %cst_22 = arith.constant 1.000000e+00 : f32
    %71 = vector.broadcast %cst_22 : f32 to vector<16x128xf32>
    %72 = arith.addf %71, %70 : vector<16x128xf32>
    %73 = arith.divf %71, %72 : vector<16x128xf32>
    %74 = arith.mulf %65, %40 : vector<16x128xf32>
    %75 = arith.mulf %59, %67 : vector<16x128xf32>
    %76 = arith.addf %74, %75 : vector<16x128xf32>
    %77 = math.tanh %76 : vector<16x128xf32>
    %78 = arith.mulf %73, %77 : vector<16x128xf32>
    %c0_23 = arith.constant 0 : index
    %c1_24 = arith.constant 1 : index
    %79 = vector.load %arg3[%c0_23, %c1_24] : memref<16x4xf32, #tpu.memory_space<vmem>>, vector<16x1xf32>
    %80 = arith.subf %76, %40 : vector<16x128xf32>
    %81 = vector.broadcast %79 : vector<16x1xf32> to vector<16x128xf32>
    %82 = arith.mulf %81, %80 : vector<16x128xf32>
    %83 = arith.addf %40, %82 : vector<16x128xf32>
    %84 = arith.subf %78, %44 : vector<16x128xf32>
    %85 = vector.broadcast %79 : vector<16x1xf32> to vector<16x128xf32>
    %86 = arith.mulf %85, %84 : vector<16x128xf32>
    %87 = arith.addf %44, %86 : vector<16x128xf32>
    %c2 = arith.constant 2 : index
    %c0_25 = arith.constant 0 : index
    %c0_26 = arith.constant 0 : index
    %88 = vector.load %arg2[%c2, %c0_25, %c0_26] : memref<4x16x128xbf16, #tpu.memory_space<vmem>>, vector<1x16x128xbf16>
    %89 = vector.shape_cast %88 : vector<1x16x128xbf16> to vector<16x128xbf16>
    %90 = arith.truncf %87 : vector<16x128xf32> to vector<16x128xbf16>
    %91 = tpu.concatenate %89, %90 in 1 : vector<16x128xbf16>, vector<16x128xbf16> -> vector<16x256xbf16>
    %c0_27 = arith.constant 0 : index
    %c0_28 = arith.constant 0 : index
    %92 = vector.load %arg4[%c0_27, %c0_28] : memref<256x512xbf16, #tpu.memory_space<vmem>>, vector<256x512xbf16>
    %cst_29 = arith.constant dense<0.000000e+00> : vector<16x512xf32>
    %93 = tpu.matmul %91, %92, %cst_29 {dimension_numbers = #tpu.dot_dimension_numbers<[1], [0], [0], [1], [0, 0, 1, 1], [], []>} : vector<16x256xbf16>, vector<256x512xbf16>, vector<16x512xf32> -> vector<16x512xf32>
    %c0_30 = arith.constant 0 : index
    %c0_31 = arith.constant 0 : index
    %94 = vector.load %arg5[%c0_30, %c0_31] : memref<1x512xf32, #tpu.memory_space<vmem>>, vector<1x512xf32>
    %95 = vector.broadcast %94 : vector<1x512xf32> to vector<16x512xf32>
    %96 = arith.addf %93, %95 : vector<16x512xf32>
    %97 = vector.extract_strided_slice %96 {offsets = [0, 0], sizes = [16, 128], strides = [1, 1]} : vector<16x512xf32> to vector<16x128xf32>
    %98 = arith.negf %97 : vector<16x128xf32>
    %99 = math.exp %98 : vector<16x128xf32>
    %cst_32 = arith.constant 1.000000e+00 : f32
    %100 = vector.broadcast %cst_32 : f32 to vector<16x128xf32>
    %101 = arith.addf %100, %99 : vector<16x128xf32>
    %102 = arith.divf %100, %101 : vector<16x128xf32>
    %103 = vector.extract_strided_slice %96 {offsets = [0, 128], sizes = [16, 128], strides = [1, 1]} : vector<16x512xf32> to vector<16x128xf32>
    %104 = arith.negf %103 : vector<16x128xf32>
    %105 = math.exp %104 : vector<16x128xf32>
    %cst_33 = arith.constant 1.000000e+00 : f32
    %106 = vector.broadcast %cst_33 : f32 to vector<16x128xf32>
    %107 = arith.addf %106, %105 : vector<16x128xf32>
    %108 = arith.divf %106, %107 : vector<16x128xf32>
    %109 = vector.extract_strided_slice %96 {offsets = [0, 256], sizes = [16, 128], strides = [1, 1]} : vector<16x512xf32> to vector<16x128xf32>
    %110 = math.tanh %109 : vector<16x128xf32>
    %111 = vector.extract_strided_slice %96 {offsets = [0, 384], sizes = [16, 128], strides = [1, 1]} : vector<16x512xf32> to vector<16x128xf32>
    %112 = arith.negf %111 : vector<16x128xf32>
    %113 = math.exp %112 : vector<16x128xf32>
    %cst_34 = arith.constant 1.000000e+00 : f32
    %114 = vector.broadcast %cst_34 : f32 to vector<16x128xf32>
    %115 = arith.addf %114, %113 : vector<16x128xf32>
    %116 = arith.divf %114, %115 : vector<16x128xf32>
    %117 = arith.mulf %108, %83 : vector<16x128xf32>
    %118 = arith.mulf %102, %110 : vector<16x128xf32>
    %119 = arith.addf %117, %118 : vector<16x128xf32>
    %120 = math.tanh %119 : vector<16x128xf32>
    %121 = arith.mulf %116, %120 : vector<16x128xf32>
    %c0_35 = arith.constant 0 : index
    %c2_36 = arith.constant 2 : index
    %122 = vector.load %arg3[%c0_35, %c2_36] : memref<16x4xf32, #tpu.memory_space<vmem>>, vector<16x1xf32>
    %123 = arith.subf %119, %83 : vector<16x128xf32>
    %124 = vector.broadcast %122 : vector<16x1xf32> to vector<16x128xf32>
    %125 = arith.mulf %124, %123 : vector<16x128xf32>
    %126 = arith.addf %83, %125 : vector<16x128xf32>
    %127 = arith.subf %121, %87 : vector<16x128xf32>
    %128 = vector.broadcast %122 : vector<16x1xf32> to vector<16x128xf32>
    %129 = arith.mulf %128, %127 : vector<16x128xf32>
    %130 = arith.addf %87, %129 : vector<16x128xf32>
    %c3 = arith.constant 3 : index
    %c0_37 = arith.constant 0 : index
    %c0_38 = arith.constant 0 : index
    %131 = vector.load %arg2[%c3, %c0_37, %c0_38] : memref<4x16x128xbf16, #tpu.memory_space<vmem>>, vector<1x16x128xbf16>
    %132 = vector.shape_cast %131 : vector<1x16x128xbf16> to vector<16x128xbf16>
    %133 = arith.truncf %130 : vector<16x128xf32> to vector<16x128xbf16>
    %134 = tpu.concatenate %132, %133 in 1 : vector<16x128xbf16>, vector<16x128xbf16> -> vector<16x256xbf16>
    %c0_39 = arith.constant 0 : index
    %c0_40 = arith.constant 0 : index
    %135 = vector.load %arg4[%c0_39, %c0_40] : memref<256x512xbf16, #tpu.memory_space<vmem>>, vector<256x512xbf16>
    %cst_41 = arith.constant dense<0.000000e+00> : vector<16x512xf32>
    %136 = tpu.matmul %134, %135, %cst_41 {dimension_numbers = #tpu.dot_dimension_numbers<[1], [0], [0], [1], [0, 0, 1, 1], [], []>} : vector<16x256xbf16>, vector<256x512xbf16>, vector<16x512xf32> -> vector<16x512xf32>
    %c0_42 = arith.constant 0 : index
    %c0_43 = arith.constant 0 : index
    %137 = vector.load %arg5[%c0_42, %c0_43] : memref<1x512xf32, #tpu.memory_space<vmem>>, vector<1x512xf32>
    %138 = vector.broadcast %137 : vector<1x512xf32> to vector<16x512xf32>
    %139 = arith.addf %136, %138 : vector<16x512xf32>
    %140 = vector.extract_strided_slice %139 {offsets = [0, 0], sizes = [16, 128], strides = [1, 1]} : vector<16x512xf32> to vector<16x128xf32>
    %141 = arith.negf %140 : vector<16x128xf32>
    %142 = math.exp %141 : vector<16x128xf32>
    %cst_44 = arith.constant 1.000000e+00 : f32
    %143 = vector.broadcast %cst_44 : f32 to vector<16x128xf32>
    %144 = arith.addf %143, %142 : vector<16x128xf32>
    %145 = arith.divf %143, %144 : vector<16x128xf32>
    %146 = vector.extract_strided_slice %139 {offsets = [0, 128], sizes = [16, 128], strides = [1, 1]} : vector<16x512xf32> to vector<16x128xf32>
    %147 = arith.negf %146 : vector<16x128xf32>
    %148 = math.exp %147 : vector<16x128xf32>
    %cst_45 = arith.constant 1.000000e+00 : f32
    %149 = vector.broadcast %cst_45 : f32 to vector<16x128xf32>
    %150 = arith.addf %149, %148 : vector<16x128xf32>
    %151 = arith.divf %149, %150 : vector<16x128xf32>
    %152 = vector.extract_strided_slice %139 {offsets = [0, 256], sizes = [16, 128], strides = [1, 1]} : vector<16x512xf32> to vector<16x128xf32>
    %153 = math.tanh %152 : vector<16x128xf32>
    %154 = vector.extract_strided_slice %139 {offsets = [0, 384], sizes = [16, 128], strides = [1, 1]} : vector<16x512xf32> to vector<16x128xf32>
    %155 = arith.negf %154 : vector<16x128xf32>
    %156 = math.exp %155 : vector<16x128xf32>
    %cst_46 = arith.constant 1.000000e+00 : f32
    %157 = vector.broadcast %cst_46 : f32 to vector<16x128xf32>
    %158 = arith.addf %157, %156 : vector<16x128xf32>
    %159 = arith.divf %157, %158 : vector<16x128xf32>
    %160 = arith.mulf %151, %126 : vector<16x128xf32>
    %161 = arith.mulf %145, %153 : vector<16x128xf32>
    %162 = arith.addf %160, %161 : vector<16x128xf32>
    %163 = math.tanh %162 : vector<16x128xf32>
    %164 = arith.mulf %159, %163 : vector<16x128xf32>
    %c0_47 = arith.constant 0 : index
    %c3_48 = arith.constant 3 : index
    %165 = vector.load %arg3[%c0_47, %c3_48] : memref<16x4xf32, #tpu.memory_space<vmem>>, vector<16x1xf32>
    %166 = arith.subf %164, %130 : vector<16x128xf32>
    %167 = vector.broadcast %165 : vector<16x1xf32> to vector<16x128xf32>
    %168 = arith.mulf %167, %166 : vector<16x128xf32>
    %169 = arith.addf %130, %168 : vector<16x128xf32>
    %c0_49 = arith.constant 0 : index
    %c0_50 = arith.constant 0 : index
    %170 = vector.load %arg1[%c0_49, %c0_50] : memref<16x128xbf16, #tpu.memory_space<vmem>>, vector<16x128xbf16>
    %171 = arith.truncf %169 : vector<16x128xf32> to vector<16x128xbf16>
    %172 = tpu.concatenate %170, %171 in 1 : vector<16x128xbf16>, vector<16x128xbf16> -> vector<16x256xbf16>
    %c0_51 = arith.constant 0 : index
    %c0_52 = arith.constant 0 : index
    %173 = vector.load %arg6[%c0_51, %c0_52] : memref<256x128xbf16, #tpu.memory_space<vmem>>, vector<256x128xbf16>
    %cst_53 = arith.constant dense<0.000000e+00> : vector<16x128xf32>
    %174 = tpu.matmul %172, %173, %cst_53 {dimension_numbers = #tpu.dot_dimension_numbers<[1], [0], [0], [1], [0, 0, 1, 1], [], []>} : vector<16x256xbf16>, vector<256x128xbf16>, vector<16x128xf32> -> vector<16x128xf32>
    %c0_54 = arith.constant 0 : index
    %c0_55 = arith.constant 0 : index
    %175 = vector.load %arg7[%c0_54, %c0_55] : memref<1x128xf32, #tpu.memory_space<vmem>>, vector<1x128xf32>
    %176 = vector.broadcast %175 : vector<1x128xf32> to vector<16x128xf32>
    %177 = arith.addf %174, %176 : vector<16x128xf32>
    %cst_56 = arith.constant 0.000000e+00 : f32
    %178 = vector.broadcast %cst_56 : f32 to vector<16x128xf32>
    %179 = arith.maximumf %177, %178 : vector<16x128xf32>
    %180 = arith.truncf %179 : vector<16x128xf32> to vector<16x128xbf16>
    %c0_57 = arith.constant 0 : index
    %c0_58 = arith.constant 0 : index
    %181 = vector.load %arg8[%c0_57, %c0_58] : memref<16x128xbf16, #tpu.memory_space<vmem>>, vector<16x128xbf16>
    tpu.vector_store %arg8[%c0_57, %c0_58], %180 {strides = array<i32>} : memref<16x128xbf16, #tpu.memory_space<vmem>>, vector<16x128xbf16>,
    return
  }
  func.func @transform_0(%arg0: i32) -> (i32, i32) {
    %c0_i32 = arith.constant 0 : i32
    %c0_i32_0 = arith.constant 0 : i32
    return %arg0, %c0_i32 : i32, i32
  }
  func.func @transform_1(%arg0: i32) -> (i32, i32, i32) {
    %c0_i32 = arith.constant 0 : i32
    %c0_i32_0 = arith.constant 0 : i32
    %c0_i32_1 = arith.constant 0 : i32
    return %c0_i32, %arg0, %c0_i32_0 : i32, i32, i32
  }
  func.func @transform_2(%arg0: i32) -> (i32, i32) {
    %c0_i32 = arith.constant 0 : i32
    %c0_i32_0 = arith.constant 0 : i32
    return %arg0, %c0_i32 : i32, i32
  }
  func.func @transform_3(%arg0: i32) -> (i32, i32) {
    %c0_i32 = arith.constant 0 : i32
    %c0_i32_0 = arith.constant 0 : i32
    %c0_i32_1 = arith.constant 0 : i32
    return %c0_i32, %c0_i32_0 : i32, i32
  }
  func.func @transform_4(%arg0: i32) -> (i32, i32) {
    %c0_i32 = arith.constant 0 : i32
    %c0_i32_0 = arith.constant 0 : i32
    %c0_i32_1 = arith.constant 0 : i32
    return %c0_i32, %c0_i32_0 : i32, i32
  }
  func.func @transform_5(%arg0: i32) -> (i32, i32) {
    %c0_i32 = arith.constant 0 : i32
    %c0_i32_0 = arith.constant 0 : i32
    %c0_i32_1 = arith.constant 0 : i32
    return %c0_i32, %c0_i32_0 : i32, i32
  }
  func.func @transform_6(%arg0: i32) -> (i32, i32) {
    %c0_i32 = arith.constant 0 : i32
    %c0_i32_0 = arith.constant 0 : i32
    %c0_i32_1 = arith.constant 0 : i32
    return %c0_i32, %c0_i32_0 : i32, i32
  }
  func.func @transform_7(%arg0: i32) -> (i32, i32) {
    %c0_i32 = arith.constant 0 : i32
    %c0_i32_0 = arith.constant 0 : i32
    return %arg0, %c0_i32 : i32, i32
  }
}

</mosaic_0001>

<llo_original>
// kernel: tpu_custom_call.1
$region0: #{tpu_custom_call.1}
  #allocation0 [shape = 'u32[]', space=smem, size = 0x4, offset = 0x4, fixed_abs, tag = 'smem constant byte address 0x4 - core index']
  #allocation1 [shape = 'u32[144,128]{1,0:T(1,128)}', space=vmem, size = 0x12000, scoped, tag = 'internal scratch']
  #allocation9 [shape = 's32[]', space=sflag, size = 0x4, offset = 0, fixed_abs, tag = 'sflag constant byte address 0x0 - dummy sync flag']
  %s0 = inlined_call_operand.vmem [shape: bf16[32,128], index: 0, kind: input, shape index: {}]
  %s1 = inlined_call_operand.hbm [shape: bf16[4,32,128], index: 1, kind: input, shape index: {}]
  %s2 = inlined_call_operand.vmem [shape: f32[32,4], index: 2, kind: input, shape index: {}]
  %s3 = inlined_call_operand.hbm [shape: bf16[256,512], index: 3, kind: input, shape index: {}]
  %s4 = inlined_call_operand.vmem [shape: f32[1,512], index: 4, kind: input, shape index: {}]
  %s5 = inlined_call_operand.hbm [shape: bf16[256,128], index: 5, kind: input, shape index: {}]
  %s6 = inlined_call_operand.vmem [shape: f32[1,128], index: 6, kind: input, shape index: {}]
  %s7 = inlined_call_operand.hbm [shape: bf16[32,128], index: 7, kind: output, shape index: {}]
  %s8 = sld [smem:[#allocation0]]
  $region73: #{tpu_custom_call.1} parent=0
    _
  %s10 = ssub.s32 1, %s8
  %s11 = scalar_select 0, %s10, %s8
  $region1: #{tpu_custom_call.1} parent=0
    #allocation2 [shape = 'u8[32768]{0}', space=vmem, size = 0x8000, scoped, tag = 'input window, operand 1']
    #allocation3 [shape = 's32[2]{0}', space=sflag, size = 0x8, scoped, tag = 'scoped memory for tpu_custom_call.1']
    #allocation4 [shape = 's32[2]{0}', space=sflag, size = 0x8, scoped, tag = 'scoped memory for tpu_custom_call.1']
    #allocation5 [shape = 'u8[262144]{0}', space=vmem, size = 0x40000, scoped, tag = 'input window, operand 3, single buffered']
    #allocation6 [shape = 's32[1]{0}', space=sflag, size = 0x4, scoped, tag = 'scoped memory for tpu_custom_call.1']
    #allocation7 [shape = 'u8[65536]{0}', space=vmem, size = 0x10000, scoped, tag = 'input window, operand 5, single buffered']
    #allocation8 [shape = 'u8[8192]{0}', space=vmem, size = 0x2000, scoped, tag = 'output window, operand 0']
    %12 = vsyncpa [#allocation3], 0
    %s13 = scalar_lea.sflag [#allocation3], 1
    %14 = vsyncpa %s13, 0
    %15 = vsyncpa [#allocation6], 0
    %16 = vsyncpa [#allocation4], 0
    %s17 = scalar_lea.sflag [#allocation4], 1
    %18 = vsyncpa %s17, 0
    loop: start=0, step=1, limit=4
    $region2: #{tpu_custom_call.1} parent=1 // loop_pre_header
      _
    $region3: #{tpu_custom_call.1} parent=1 // loop_header
      %s20 = sphi 0, %s24
      %p21 = scmp.ge.s32.totalorder %s20, 4
      %s30 = sphi 0, %s32
      %s33 = sphi 0, %s30
      %s34 = sphi 0, %s33
      %s50 = sphi 0, %s34
      %s56 = sphi 0, %s58
      %s59 = sphi 0, %s56
      %s60 = sphi 0, %s59
      %s76 = sphi 0, %s60
      %s82 = sphi 0, %s84
      %s85 = sphi 0, %s82
      %s86 = sphi 0, %s85
      %s102 = sphi 0, %s86
      %s106 = sphi 0, %s106
      %s108 = sphi 0, %s106
      %s109 = sphi 0, %s108
      %s123 = sphi 0, %s109
      %s127 = sphi 0, %s127
      %s129 = sphi 0, %s127
      %s130 = sphi 0, %s129
      %s144 = sphi 0, %s130
      %s148 = sphi 0, %s148
      %s150 = sphi 0, %s148
      %s151 = sphi 0, %s150
      %s165 = sphi 0, %s151
      %s169 = sphi 0, %s169
      %s171 = sphi 0, %s169
      %s172 = sphi 0, %s171
      %s186 = sphi 0, %s172
      %s192 = sphi 0, %s194
      %s195 = sphi 0, %s192
      %s196 = sphi 0, %s195
      %s212 = sphi 0, %s196
    $region4: #{tpu_custom_call.1} parent=1 // loop_header_branch
      %23 = sbr.rel (%p21) target = $region8
    $region5: #{tpu_custom_call.1} parent=1 // loop_body
      %s25 = ssub.s32 %s20, 1
      %s26 = ssub.s32 %s20, 2
      %s27 = sadd.s32 %s20, 1
      %s28 = ssub.s32 %s20, %s27
      %p29 = scmp.eq.s32.totalorder %s28, 0
      %s31 = sadd.s32 %s30, 1
      %s32 = scalar_select %p29, %s30, %s31
      %p35 = pneg %p29
      %p36 = scmp.eq.s32.totalorder %s20, 1
      %p37 = por %p35, %p36
      %p38 = scmp.ne.s32.totalorder %s30, %s33
      %p39 = scmp.eq.s32.totalorder %s20, 0
      %p40 = por %p38, %p39
      %p41 = scmp.ne.s32.totalorder %s30, %s33
      %p42 = scmp.eq.s32.totalorder %s25, 1
      %p43 = por %p41, %p42
      %p44 = scmp.ne.s32.totalorder %s33, %s34
      %p45 = scmp.eq.s32.totalorder %s25, 0
      %p46 = por %p44, %p45
      %p47 = scmp.ne.s32.totalorder %s33, %s34
      %p48 = scmp.eq.s32.totalorder %s26, 1
      %p49 = por %p47, %p48
      %p51 = scmp.ne.s32.totalorder %s34, %s50
      %p52 = scmp.eq.s32.totalorder %s26, 0
      %p53 = por %p51, %p52
      %s54 = ssub.s32 %s20, %s27
      %p55 = scmp.eq.s32.totalorder %s54, 0
      %s57 = sadd.s32 %s56, 1
      %s58 = scalar_select %p55, %s56, %s57
      %p61 = pneg %p55
      %p62 = scmp.eq.s32.totalorder %s20, 1
      %p63 = por %p61, %p62
      %p64 = scmp.ne.s32.totalorder %s56, %s59
      %p65 = scmp.eq.s32.totalorder %s20, 0
      %p66 = por %p64, %p65
      %p67 = scmp.ne.s32.totalorder %s56, %s59
      %p68 = scmp.eq.s32.totalorder %s25, 1
      %p69 = por %p67, %p68
      %p70 = scmp.ne.s32.totalorder %s59, %s60
      %p71 = scmp.eq.s32.totalorder %s25, 0
      %p72 = por %p70, %p71
      %p73 = scmp.ne.s32.totalorder %s59, %s60
      %p74 = scmp.eq.s32.totalorder %s26, 1
      %p75 = por %p73, %p74
      %p77 = scmp.ne.s32.totalorder %s60, %s76
      %p78 = scmp.eq.s32.totalorder %s26, 0
      %p79 = por %p77, %p78
      %s80 = ssub.s32 %s20, %s27
      %p81 = scmp.eq.s32.totalorder %s80, 0
      %s83 = sadd.s32 %s82, 1
      %s84 = scalar_select %p81, %s82, %s83
      %p87 = pneg %p81
      %p88 = scmp.eq.s32.totalorder %s20, 1
      %p89 = por %p87, %p88
      %p90 = scmp.ne.s32.totalorder %s82, %s85
      %p91 = scmp.eq.s32.totalorder %s20, 0
      %p92 = por %p90, %p91
      %p93 = scmp.ne.s32.totalorder %s82, %s85
      %p94 = scmp.eq.s32.totalorder %s25, 1
      %p95 = por %p93, %p94
      %p96 = scmp.ne.s32.totalorder %s85, %s86
      %p97 = scmp.eq.s32.totalorder %s25, 0
      %p98 = por %p96, %p97
      %p99 = scmp.ne.s32.totalorder %s85, %s86
      %p100 = scmp.eq.s32.totalorder %s26, 1
      %p101 = por %p99, %p100
      %p103 = scmp.ne.s32.totalorder %s86, %s102
      %p104 = scmp.eq.s32.totalorder %s26, 0
      %p105 = por %p103, %p104
      %s107 = sadd.s32 %s106, 1
      %p110 = scmp.eq.s32.totalorder %s20, 1
      %p111 = scmp.ne.s32.totalorder %s106, %s108
      %p112 = scmp.eq.s32.totalorder %s20, 0
      %p113 = por %p111, %p112
      %p114 = scmp.ne.s32.totalorder %s106, %s108
      %p115 = scmp.eq.s32.totalorder %s25, 1
      %p116 = por %p114, %p115
      %p117 = scmp.ne.s32.totalorder %s108, %s109
      %p118 = scmp.eq.s32.totalorder %s25, 0
      %p119 = por %p117, %p118
      %p120 = scmp.ne.s32.totalorder %s108, %s109
      %p121 = scmp.eq.s32.totalorder %s26, 1
      %p122 = por %p120, %p121
      %p124 = scmp.ne.s32.totalorder %s109, %s123
      %p125 = scmp.eq.s32.totalorder %s26, 0
      %p126 = por %p124, %p125
      %s128 = sadd.s32 %s127, 1
      %p131 = scmp.eq.s32.totalorder %s20, 1
      %p132 = scmp.ne.s32.totalorder %s127, %s129
      %p133 = scmp.eq.s32.totalorder %s20, 0
      %p134 = por %p132, %p133
      %p135 = scmp.ne.s32.totalorder %s127, %s129
      %p136 = scmp.eq.s32.totalorder %s25, 1
      %p137 = por %p135, %p136
      %p138 = scmp.ne.s32.totalorder %s129, %s130
      %p139 = scmp.eq.s32.totalorder %s25, 0
      %p140 = por %p138, %p139
      %p141 = scmp.ne.s32.totalorder %s129, %s130
      %p142 = scmp.eq.s32.totalorder %s26, 1
      %p143 = por %p141, %p142
      %p145 = scmp.ne.s32.totalorder %s130, %s144
      %p146 = scmp.eq.s32.totalorder %s26, 0
      %p147 = por %p145, %p146
      %s149 = sadd.s32 %s148, 1
      %p152 = scmp.eq.s32.totalorder %s20, 1
      %p153 = scmp.ne.s32.totalorder %s148, %s150
      %p154 = scmp.eq.s32.totalorder %s20, 0
      %p155 = por %p153, %p154
      %p156 = scmp.ne.s32.totalorder %s148, %s150
      %p157 = scmp.eq.s32.totalorder %s25, 1
      %p158 = por %p156, %p157
      %p159 = scmp.ne.s32.totalorder %s150, %s151
      %p160 = scmp.eq.s32.totalorder %s25, 0
      %p161 = por %p159, %p160
      %p162 = scmp.ne.s32.totalorder %s150, %s151
      %p163 = scmp.eq.s32.totalorder %s26, 1
      %p164 = por %p162, %p163
      %p166 = scmp.ne.s32.totalorder %s151, %s165
      %p167 = scmp.eq.s32.totalorder %s26, 0
      %p168 = por %p166, %p167
      %s170 = sadd.s32 %s169, 1
      %p173 = scmp.eq.s32.totalorder %s20, 1
      %p174 = scmp.ne.s32.totalorder %s169, %s171
      %p175 = scmp.eq.s32.totalorder %s20, 0
      %p176 = por %p174, %p175
      %p177 = scmp.ne.s32.totalorder %s169, %s171
      %p178 = scmp.eq.s32.totalorder %s25, 1
      %p179 = por %p177, %p178
      %p180 = scmp.ne.s32.totalorder %s171, %s172
      %p181 = scmp.eq.s32.totalorder %s25, 0
      %p182 = por %p180, %p181
      %p183 = scmp.ne.s32.totalorder %s171, %s172
      %p184 = scmp.eq.s32.totalorder %s26, 1
      %p185 = por %p183, %p184
      %p187 = scmp.ne.s32.totalorder %s172, %s186
      %p188 = scmp.eq.s32.totalorder %s26, 0
      %p189 = por %p187, %p188
      %s190 = ssub.s32 %s20, %s27
      %p191 = scmp.eq.s32.totalorder %s190, 0
      %s193 = sadd.s32 %s192, 1
      %s194 = scalar_select %p191, %s192, %s193
      %p197 = pneg %p191
      %p198 = scmp.eq.s32.totalorder %s20, 1
      %p199 = por %p197, %p198
      %p200 = scmp.ne.s32.totalorder %s192, %s195
      %p201 = scmp.eq.s32.totalorder %s20, 0
      %p202 = por %p200, %p201
      %p203 = scmp.ne.s32.totalorder %s192, %s195
      %p204 = scmp.eq.s32.totalorder %s25, 1
      %p205 = por %p203, %p204
      %p206 = scmp.ne.s32.totalorder %s195, %s196
      %p207 = scmp.eq.s32.totalorder %s25, 0
      %p208 = por %p206, %p207
      %p209 = scmp.ne.s32.totalorder %s195, %s196
      %p210 = scmp.eq.s32.totalorder %s26, 1
      %p211 = por %p209, %p210
      %p213 = scmp.ne.s32.totalorder %s196, %s212
      %p214 = scmp.eq.s32.totalorder %s26, 0
      %p215 = por %p213, %p214
      %p216 = scmp.le.s32.totalorder 1, %s20
      %p217 = scmp.lt.s32.totalorder %s20, 3
      %p218 = pnand %p216, %p217
      %p219 = pneg %p218
      // Predicated region
      $region9: #{tpu_custom_call.1} parent=5 // pred_check
        _
      $region10: #{tpu_custom_call.1} parent=5 // pred_check_branch
        %221 = sbr.rel (%p218) target = $region12
      $region11: #{tpu_custom_call.1} parent=5 // pred_region
        %s222 = ssub.s32 %s20, 1
        // Predicated region
        $region13: #{tpu_custom_call.1} parent=11 // pred_check
          %p223 = pneg %p119
        $region14: #{tpu_custom_call.1} parent=11 // pred_check_branch
          %225 = sbr.rel (%p223) target = $region16
        $region15: #{tpu_custom_call.1} parent=11 // pred_region
          %s227 = ssub.s32 8192, 8192
          %228 = vsyncadd [#allocation6], %s227
          %s229 = sshll.u32 [#allocation5], 4
          %s230 = int_to_ptr.vmem [resolvable:$true] %s229
          %235 = dma.hbm_to_vmem [thread:$0]  %s3, 8192, %s230, [#allocation6], 256, 256, 16
        $region16: #{tpu_custom_call.1} parent=11 // pred_fallthru
          _
        // Predicated region
        $region17: #{tpu_custom_call.1} parent=11 // pred_check
          %p236 = pneg %p140
        $region18: #{tpu_custom_call.1} parent=11 // pred_check_branch
          %238 = sbr.rel (%p236) target = $region20
        $region19: #{tpu_custom_call.1} parent=11 // pred_region
          _
        $region20: #{tpu_custom_call.1} parent=11 // pred_fallthru
          _
        // Predicated region
        $region21: #{tpu_custom_call.1} parent=11 // pred_check
          %p239 = pneg %p161
        $region22: #{tpu_custom_call.1} parent=11 // pred_check_branch
          %241 = sbr.rel (%p239) target = $region24
        $region23: #{tpu_custom_call.1} parent=11 // pred_region
          %s243 = ssub.s32 2048, 2048
          %244 = vsyncadd [#allocation6], %s243
          %s245 = sshll.u32 [#allocation7], 4
          %s246 = int_to_ptr.vmem [resolvable:$true] %s245
          %251 = dma.hbm_to_vmem [thread:$0]  %s5, 2048, %s246, [#allocation6], 64, 64, 4
        $region24: #{tpu_custom_call.1} parent=11 // pred_fallthru
          _
        // Predicated region
        $region25: #{tpu_custom_call.1} parent=11 // pred_check
          %p252 = pneg %p182
        $region26: #{tpu_custom_call.1} parent=11 // pred_check_branch
          %254 = sbr.rel (%p252) target = $region28
        $region27: #{tpu_custom_call.1} parent=11 // pred_region
          _
        $region28: #{tpu_custom_call.1} parent=11 // pred_fallthru
          _
      $region12: #{tpu_custom_call.1} parent=5 // pred_fallthru
        _
      %p255 = scmp.lt.s32.totalorder %s20, 2
      // Predicated region
      $region29: #{tpu_custom_call.1} parent=5 // pred_check
        %p256 = pneg %p255
      $region30: #{tpu_custom_call.1} parent=5 // pred_check_branch
        %258 = sbr.rel (%p256) target = $region32
      $region31: #{tpu_custom_call.1} parent=5 // pred_region
        // Predicated region
        $region33: #{tpu_custom_call.1} parent=31 // pred_check
          %p259 = pneg %p40
        $region34: #{tpu_custom_call.1} parent=31 // pred_check_branch
          %261 = sbr.rel (%p259) target = $region36
        $region35: #{tpu_custom_call.1} parent=31 // pred_region
          %s262 = smul.u32 2, %s20
          %p263 = scmp.lt.s32.totalorder %s262, 3
          %s264 = scalar_select %p263, %s262, 3
          %s265 = smul.addr %s264, 4
          %s266 = scalar_lea.vmem %s0, %s265
          %s267 = smul.u32 2, %s20
        $region36: #{tpu_custom_call.1} parent=31 // pred_fallthru
          _
        // Predicated region
        $region37: #{tpu_custom_call.1} parent=31 // pred_check
          %p268 = pneg %p66
        $region38: #{tpu_custom_call.1} parent=31 // pred_check_branch
          %270 = sbr.rel (%p268) target = $region40
        $region39: #{tpu_custom_call.1} parent=31 // pred_region
          #allocation10 [shape = 'u32[6]{0}', space=smem, size = 0x18, scoped, tag = 'DMA stride descriptor']
          %s271 = sand.u32 %s56, 1
          %s272 = scalar_lea.sflag [#allocation3], %s271
          %s273 = sand.u32 %s56, 1
          %s274 = smul.addr %s273, 32
          %s275 = scalar_lea.vmem [#allocation2], %s274
          %s276 = smul.u32 2, %s20
          %s278 = ssub.s32 512, 512
          %279 = vsyncadd %s272, %s278
          %s280 = smul.addr %s276, 64
          %s281 = scalar_lea.hbm %s1, %s280
          %s283 = sshll.u32 1, 14
          %s284 = sxor.u32 4294967295, %s283
          %s286 = sld [smem:[#allocation0]]
          %s287 = sadd.s32 2, %s286
          %s289 = sshll.u32 7, 26
          %s290 = sxor.u32 4294967295, %s289
          %s291 = sand.u32 0, %s290
          %s292 = sshll.u32 %s287, 26
          %s293 = sor.u32 %s291, %s292
          %s294 = sshll.u32 %s275, 4
          %s295 = int_to_ptr.vmem [resolvable:$true] %s294
          %301 = sst [smem:[#allocation10]] 256
          %s302 = scalar_lea.smem [#allocation10], 1
          %303 = sst [smem:[%s302]] 128
          %s304 = scalar_lea.smem [#allocation10], 2
          %305 = sst [smem:[%s304]] 2
          %s306 = scalar_lea.smem [#allocation10], 3
          %307 = sst [smem:[%s306]] 64
          %s308 = scalar_lea.smem [#allocation10], 4
          %309 = sst [smem:[%s308]] 64
          %s310 = scalar_lea.smem [#allocation10], 5
          %311 = sst [smem:[%s310]] 4
          %313 = dma.general %s281, 512, %s295, %s272, 131072, [#allocation10], %s293, 0
        $region40: #{tpu_custom_call.1} parent=31 // pred_fallthru
          _
        // Predicated region
        $region41: #{tpu_custom_call.1} parent=31 // pred_check
          %p314 = pneg %p92
        $region42: #{tpu_custom_call.1} parent=31 // pred_check_branch
          %316 = sbr.rel (%p314) target = $region44
        $region43: #{tpu_custom_call.1} parent=31 // pred_region
          %s317 = smul.u32 2, %s20
          %p318 = scmp.lt.s32.totalorder %s317, 3
          %s319 = scalar_select %p318, %s317, 3
          %s320 = smul.addr %s319, 8
          %s321 = scalar_lea.vmem %s2, %s320
          %s322 = smul.u32 2, %s20
        $region44: #{tpu_custom_call.1} parent=31 // pred_fallthru
          _
      $region32: #{tpu_custom_call.1} parent=5 // pred_fallthru
        _
      %p323 = scmp.le.s32.totalorder 1, %s20
      %p324 = scmp.lt.s32.totalorder %s20, 3
      %p325 = pnand %p323, %p324
      %p326 = pneg %p325
      // Predicated region
      $region45: #{tpu_custom_call.1} parent=5 // pred_check
        _
      $region46: #{tpu_custom_call.1} parent=5 // pred_check_branch
        %328 = sbr.rel (%p325) target = $region48
      $region47: #{tpu_custom_call.1} parent=5 // pred_region
        %s329 = ssub.s32 %s20, 1
        %s330 = sand.u32 %s59, 1
        %s331 = scalar_lea.sflag [#allocation3], %s330
        %s332 = sand.u32 %s59, 1
        %s333 = smul.addr %s332, 32
        %s334 = scalar_lea.vmem [#allocation2], %s333
        // Predicated region
        $region49: #{tpu_custom_call.1} parent=47 // pred_check
          %p335 = pneg %p72
        $region50: #{tpu_custom_call.1} parent=47 // pred_check_branch
          %337 = sbr.rel (%p335) target = $region52
        $region51: #{tpu_custom_call.1} parent=47 // pred_region
          %338 = dma.done %s331, 512
        $region52: #{tpu_custom_call.1} parent=47 // pred_fallthru
          _
        // Predicated region
        $region53: #{tpu_custom_call.1} parent=47 // pred_check
          %p339 = pneg %p119
        $region54: #{tpu_custom_call.1} parent=47 // pred_check_branch
          %341 = sbr.rel (%p339) target = $region56
        $region55: #{tpu_custom_call.1} parent=47 // pred_region
          %342 = dma.done [#allocation6], 8192
        $region56: #{tpu_custom_call.1} parent=47 // pred_fallthru
          _
        // Predicated region
        $region57: #{tpu_custom_call.1} parent=47 // pred_check
          %p343 = pneg %p161
        $region58: #{tpu_custom_call.1} parent=47 // pred_check_branch
          %345 = sbr.rel (%p343) target = $region60
        $region59: #{tpu_custom_call.1} parent=47 // pred_region
          %346 = dma.done [#allocation6], 2048
        $region60: #{tpu_custom_call.1} parent=47 // pred_fallthru
          _
        %s347 = smul.u32 2, %s25
        %p348 = scmp.lt.s32.totalorder %s347, 3
        %s349 = scalar_select %p348, %s347, 3
        %s350 = smul.addr %s349, 4
        %s351 = scalar_lea.vmem %s0, %s350
        %p352 = pneg %p46
        %p353 = pneg %p43
        %s354 = sand.u32 %s59, 1
        %s355 = scalar_lea.sflag [#allocation3], %s354
        %s356 = sand.u32 %s59, 1
        %s357 = smul.addr %s356, 32
        %s358 = scalar_lea.vmem [#allocation2], %s357
        %p359 = pneg %p72
        %p360 = pneg %p69
        %s361 = smul.u32 2, %s25
        %p362 = scmp.lt.s32.totalorder %s361, 3
        %s363 = scalar_select %p362, %s361, 3
        %s364 = smul.addr %s363, 8
        %s365 = scalar_lea.vmem %s2, %s364
        %p366 = pneg %p98
        %p367 = pneg %p95
        %p368 = pneg %p119
        %p369 = pneg %p116
        %p370 = pneg %p140
        %p371 = pneg %p137
        %p372 = pneg %p161
        %p373 = pneg %p158
        %p374 = pneg %p182
        %p375 = pneg %p179
        %p376 = pneg %p208
        %p377 = pneg %p205
        %s378 = sand.u32 %s195, 1
        %s379 = scalar_lea.sflag [#allocation4], %s378
        %s380 = sand.u32 %s195, 1
        %s381 = smul.addr %s380, 8
        %s382 = scalar_lea.vmem [#allocation8], %s381
        %s383 = smul.u32 2, %s25
        %p384 = scmp.lt.s32.totalorder %s383, 3
        %s385 = scalar_select %p384, %s383, 3
        %s386 = smul.addr %s385, 4
        %s387 = scalar_lea.vmem %s0, %s386
        %s388 = smul.u32 2, %s25
        %s389 = smul.u32 2, %s25
        %s390 = smul.u32 2, %s25
        %p391 = scmp.lt.s32.totalorder %s390, 3
        %s392 = scalar_select %p391, %s390, 3
        %s393 = smul.addr %s392, 8
        %s394 = scalar_lea.vmem %s2, %s393
        %s395 = smul.u32 2, %s25
        %s396 = smul.u32 2, %s25
        %v398 = vld [vmem:[%s334] sm:$0xf]
        %v399 = vld [vmem:[%s334 + $0x4] sm:$0xf]
        %v402 = vunpack.c.l.b16 %v398
        %v403 = vunpack.c.l.b16 %v399
        %v404 = vpack.c.b16 %v403, %v402
        %v406 = vld [vmem:[#allocation5] sm:$0xff]
        %v407 = vld [vmem:[#allocation5 + $0x8] sm:$0xff]
        %v408 = vld [vmem:[#allocation5 + $0x10] sm:$0xff]
        %v409 = vld [vmem:[#allocation5 + $0x18] sm:$0xff]
        %v410 = vld [vmem:[#allocation5 + $0x20] sm:$0xff]
        %v411 = vld [vmem:[#allocation5 + $0x28] sm:$0xff]
        %v412 = vld [vmem:[#allocation5 + $0x30] sm:$0xff]
        %v413 = vld [vmem:[#allocation5 + $0x38] sm:$0xff]
        %v414 = vld [vmem:[#allocation5 + $0x40] sm:$0xff]
        %v415 = vld [vmem:[#allocation5 + $0x48] sm:$0xff]
        %v416 = vld [vmem:[#allocation5 + $0x50] sm:$0xff]
        %v417 = vld [vmem:[#allocation5 + $0x58] sm:$0xff]
        %v418 = vld [vmem:[#allocation5 + $0x60] sm:$0xff]
        %v419 = vld [vmem:[#allocation5 + $0x68] sm:$0xff]
        %v420 = vld [vmem:[#allocation5 + $0x70] sm:$0xff]
        %v421 = vld [vmem:[#allocation5 + $0x78] sm:$0xff]
        %v422 = vld [vmem:[#allocation5 + $0x80] sm:$0xff]
        %v423 = vld [vmem:[#allocation5 + $0x88] sm:$0xff]
        %v424 = vld [vmem:[#allocation5 + $0x90] sm:$0xff]
        %v425 = vld [vmem:[#allocation5 + $0x98] sm:$0xff]
        %v426 = vld [vmem:[#allocation5 + $0xa0] sm:$0xff]
        %v427 = vld [vmem:[#allocation5 + $0xa8] sm:$0xff]
        %v428 = vld [vmem:[#allocation5 + $0xb0] sm:$0xff]
        %v429 = vld [vmem:[#allocation5 + $0xb8] sm:$0xff]
        %v430 = vld [vmem:[#allocation5 + $0xc0] sm:$0xff]
        %v431 = vld [vmem:[#allocation5 + $0xc8] sm:$0xff]
        %v432 = vld [vmem:[#allocation5 + $0xd0] sm:$0xff]
        %v433 = vld [vmem:[#allocation5 + $0xd8] sm:$0xff]
        %v434 = vld [vmem:[#allocation5 + $0xe0] sm:$0xff]
        %v435 = vld [vmem:[#allocation5 + $0xe8] sm:$0xff]
        %v436 = vld [vmem:[#allocation5 + $0xf0] sm:$0xff]
        %v437 = vld [vmem:[#allocation5 + $0xf8] sm:$0xff]
        %v438 = vld [vmem:[#allocation5 + $0x100] sm:$0xff]
        %v439 = vld [vmem:[#allocation5 + $0x108] sm:$0xff]
        %v440 = vld [vmem:[#allocation5 + $0x110] sm:$0xff]
        %v441 = vld [vmem:[#allocation5 + $0x118] sm:$0xff]
        %v442 = vld [vmem:[#allocation5 + $0x120] sm:$0xff]
        %v443 = vld [vmem:[#allocation5 + $0x128] sm:$0xff]
        %v444 = vld [vmem:[#allocation5 + $0x130] sm:$0xff]
        %v445 = vld [vmem:[#allocation5 + $0x138] sm:$0xff]
        %v446 = vld [vmem:[#allocation5 + $0x140] sm:$0xff]
        %v447 = vld [vmem:[#allocation5 + $0x148] sm:$0xff]
        %v448 = vld [vmem:[#allocation5 + $0x150] sm:$0xff]
        %v449 = vld [vmem:[#allocation5 + $0x158] sm:$0xff]
        %v450 = vld [vmem:[#allocation5 + $0x160] sm:$0xff]
        %v451 = vld [vmem:[#allocation5 + $0x168] sm:$0xff]
        %v452 = vld [vmem:[#allocation5 + $0x170] sm:$0xff]
        %v453 = vld [vmem:[#allocation5 + $0x178] sm:$0xff]
        %v454 = vld [vmem:[#allocation5 + $0x180] sm:$0xff]
        %v455 = vld [vmem:[#allocation5 + $0x188] sm:$0xff]
        %v456 = vld [vmem:[#allocation5 + $0x190] sm:$0xff]
        %v457 = vld [vmem:[#allocation5 + $0x198] sm:$0xff]
        %v458 = vld [vmem:[#allocation5 + $0x1a0] sm:$0xff]
        %v459 = vld [vmem:[#allocation5 + $0x1a8] sm:$0xff]
        %v460 = vld [vmem:[#allocation5 + $0x1b0] sm:$0xff]
        %v461 = vld [vmem:[#allocation5 + $0x1b8] sm:$0xff]
        %v462 = vld [vmem:[#allocation5 + $0x1c0] sm:$0xff]
        %v463 = vld [vmem:[#allocation5 + $0x1c8] sm:$0xff]
        %v464 = vld [vmem:[#allocation5 + $0x1d0] sm:$0xff]
        %v465 = vld [vmem:[#allocation5 + $0x1d8] sm:$0xff]
        %v466 = vld [vmem:[#allocation5 + $0x1e0] sm:$0xff]
        %v467 = vld [vmem:[#allocation5 + $0x1e8] sm:$0xff]
        %v468 = vld [vmem:[#allocation5 + $0x1f0] sm:$0xff]
        %v469 = vld [vmem:[#allocation5 + $0x1f8] sm:$0xff]
        %v470 = vld [vmem:[%s4] sm:$0xf]
        %v472 = vlaneseq
        %v473 = vshrl.u32 %v472, 7
        %v474 = vsub.s32 0, %v473
        %v475 = vrot.slane %v470, %v474
        %v476 = vlaneseq
        %v477 = vshrl.u32 %v476, 7
        %v478 = vsub.s32 1, %v477
        %v479 = vrot.slane %v470, %v478
        %v480 = vlaneseq
        %v481 = vshrl.u32 %v480, 7
        %v482 = vsub.s32 2, %v481
        %v483 = vrot.slane %v470, %v482
        %v484 = vlaneseq
        %v485 = vshrl.u32 %v484, 7
        %v486 = vsub.s32 3, %v485
        %v487 = vrot.slane %v470, %v486
        %v556 = vunpack.c.l.b16 %v406
        %v557 = vunpack.c.h.b16 %v406
        %v558 = vunpack.c.l.b16 %v407
        %v559 = vunpack.c.h.b16 %v407
        %v560 = vunpack.c.l.b16 %v408
        %v561 = vunpack.c.h.b16 %v408
        %v562 = vunpack.c.l.b16 %v409
        %v563 = vunpack.c.h.b16 %v409
        %v564 = vunpack.c.l.b16 %v410
        %v565 = vunpack.c.h.b16 %v410
        %v566 = vunpack.c.l.b16 %v411
        %v567 = vunpack.c.h.b16 %v411
        %v568 = vunpack.c.l.b16 %v412
        %v569 = vunpack.c.h.b16 %v412
        %v570 = vunpack.c.l.b16 %v413
        %v571 = vunpack.c.h.b16 %v413
        %v572 = vunpack.c.l.b16 %v414
        %v573 = vunpack.c.h.b16 %v414
        %v574 = vunpack.c.l.b16 %v415
        %v575 = vunpack.c.h.b16 %v415
        %v576 = vunpack.c.l.b16 %v416
        %v577 = vunpack.c.h.b16 %v416
        %v578 = vunpack.c.l.b16 %v417
        %v579 = vunpack.c.h.b16 %v417
        %v580 = vunpack.c.l.b16 %v418
        %v581 = vunpack.c.h.b16 %v418
        %v582 = vunpack.c.l.b16 %v419
        %v583 = vunpack.c.h.b16 %v419
        %v584 = vunpack.c.l.b16 %v420
        %v585 = vunpack.c.h.b16 %v420
        %v586 = vunpack.c.l.b16 %v421
        %v587 = vunpack.c.h.b16 %v421
        %v588 = vunpack.c.l.b16 %v422
        %v589 = vunpack.c.h.b16 %v422
        %v590 = vunpack.c.l.b16 %v423
        %v591 = vunpack.c.h.b16 %v423
        %v592 = vunpack.c.l.b16 %v424
        %v593 = vunpack.c.h.b16 %v424
        %v594 = vunpack.c.l.b16 %v425
        %v595 = vunpack.c.h.b16 %v425
        %v596 = vunpack.c.l.b16 %v426
        %v597 = vunpack.c.h.b16 %v426
        %v598 = vunpack.c.l.b16 %v427
        %v599 = vunpack.c.h.b16 %v427
        %v600 = vunpack.c.l.b16 %v428
        %v601 = vunpack.c.h.b16 %v428
        %v602 = vunpack.c.l.b16 %v429
        %v603 = vunpack.c.h.b16 %v429
        %v604 = vunpack.c.l.b16 %v430
        %v605 = vunpack.c.h.b16 %v430
        %v606 = vunpack.c.l.b16 %v431
        %v607 = vunpack.c.h.b16 %v431
        %v608 = vunpack.c.l.b16 %v432
        %v609 = vunpack.c.h.b16 %v432
        %v610 = vunpack.c.l.b16 %v433
        %v611 = vunpack.c.h.b16 %v433
        %v612 = vunpack.c.l.b16 %v434
        %v613 = vunpack.c.h.b16 %v434
        %v614 = vunpack.c.l.b16 %v435
        %v615 = vunpack.c.h.b16 %v435
        %v616 = vunpack.c.l.b16 %v436
        %v617 = vunpack.c.h.b16 %v436
        %v618 = vunpack.c.l.b16 %v437
        %v619 = vunpack.c.h.b16 %v437
        %v620 = vunpack.c.l.b16 %v438
        %v621 = vunpack.c.h.b16 %v438
        %v622 = vunpack.c.l.b16 %v439
        %v623 = vunpack.c.h.b16 %v439
        %v624 = vunpack.c.l.b16 %v440
        %v625 = vunpack.c.h.b16 %v440
        %v626 = vunpack.c.l.b16 %v441
        %v627 = vunpack.c.h.b16 %v441
        %v628 = vunpack.c.l.b16 %v442
        %v629 = vunpack.c.h.b16 %v442
        %v630 = vunpack.c.l.b16 %v443
        %v631 = vunpack.c.h.b16 %v443
        %v632 = vunpack.c.l.b16 %v444
        %v633 = vunpack.c.h.b16 %v444
        %v634 = vunpack.c.l.b16 %v445
        %v635 = vunpack.c.h.b16 %v445
        %v636 = vunpack.c.l.b16 %v446
        %v637 = vunpack.c.h.b16 %v446
        %v638 = vunpack.c.l.b16 %v447
        %v639 = vunpack.c.h.b16 %v447
        %v640 = vunpack.c.l.b16 %v448
        %v641 = vunpack.c.h.b16 %v448
        %v642 = vunpack.c.l.b16 %v449
        %v643 = vunpack.c.h.b16 %v449
        %v644 = vunpack.c.l.b16 %v450
        %v645 = vunpack.c.h.b16 %v450
        %v646 = vunpack.c.l.b16 %v451
        %v647 = vunpack.c.h.b16 %v451
        %v648 = vunpack.c.l.b16 %v452
        %v649 = vunpack.c.h.b16 %v452
        %v650 = vunpack.c.l.b16 %v453
        %v651 = vunpack.c.h.b16 %v453
        %v652 = vunpack.c.l.b16 %v454
        %v653 = vunpack.c.h.b16 %v454
        %v654 = vunpack.c.l.b16 %v455
        %v655 = vunpack.c.h.b16 %v455
        %v656 = vunpack.c.l.b16 %v456
        %v657 = vunpack.c.h.b16 %v456
        %v658 = vunpack.c.l.b16 %v457
        %v659 = vunpack.c.h.b16 %v457
        %v660 = vunpack.c.l.b16 %v458
        %v661 = vunpack.c.h.b16 %v458
        %v662 = vunpack.c.l.b16 %v459
        %v663 = vunpack.c.h.b16 %v459
        %v664 = vunpack.c.l.b16 %v460
        %v665 = vunpack.c.h.b16 %v460
        %v666 = vunpack.c.l.b16 %v461
        %v667 = vunpack.c.h.b16 %v461
        %v668 = vunpack.c.l.b16 %v462
        %v669 = vunpack.c.h.b16 %v462
        %v670 = vunpack.c.l.b16 %v463
        %v671 = vunpack.c.h.b16 %v463
        %v672 = vunpack.c.l.b16 %v464
        %v673 = vunpack.c.h.b16 %v464
        %v674 = vunpack.c.l.b16 %v465
        %v675 = vunpack.c.h.b16 %v465
        %v676 = vunpack.c.l.b16 %v466
        %v677 = vunpack.c.h.b16 %v466
        %v678 = vunpack.c.l.b16 %v467
        %v679 = vunpack.c.h.b16 %v467
        %v680 = vunpack.c.l.b16 %v468
        %v681 = vunpack.c.h.b16 %v468
        %v682 = vunpack.c.l.b16 %v469
        %v683 = vunpack.c.h.b16 %v469
        %v684 = vpack.c.b16 %v560, %v556
        %v685 = vpack.c.b16 %v561, %v557
        %v686 = vpack.c.b16 %v562, %v558
        %v687 = vpack.c.b16 %v563, %v559
        %v688 = vpack.c.b16 %v568, %v564
        %v689 = vpack.c.b16 %v569, %v565
        %v690 = vpack.c.b16 %v570, %v566
        %v691 = vpack.c.b16 %v571, %v567
        %v692 = vpack.c.b16 %v576, %v572
        %v693 = vpack.c.b16 %v577, %v573
        %v694 = vpack.c.b16 %v578, %v574
        %v695 = vpack.c.b16 %v579, %v575
        %v696 = vpack.c.b16 %v584, %v580
        %v697 = vpack.c.b16 %v585, %v581
        %v698 = vpack.c.b16 %v586, %v582
        %v699 = vpack.c.b16 %v587, %v583
        %v700 = vpack.c.b16 %v592, %v588
        %v701 = vpack.c.b16 %v593, %v589
        %v702 = vpack.c.b16 %v594, %v590
        %v703 = vpack.c.b16 %v595, %v591
        %v704 = vpack.c.b16 %v600, %v596
        %v705 = vpack.c.b16 %v601, %v597
        %v706 = vpack.c.b16 %v602, %v598
        %v707 = vpack.c.b16 %v603, %v599
        %v708 = vpack.c.b16 %v608, %v604
        %v709 = vpack.c.b16 %v609, %v605
        %v710 = vpack.c.b16 %v610, %v606
        %v711 = vpack.c.b16 %v611, %v607
        %v712 = vpack.c.b16 %v616, %v612
        %v713 = vpack.c.b16 %v617, %v613
        %v714 = vpack.c.b16 %v618, %v614
        %v715 = vpack.c.b16 %v619, %v615
        %v716 = vpack.c.b16 %v624, %v620
        %v717 = vpack.c.b16 %v625, %v621
        %v718 = vpack.c.b16 %v626, %v622
        %v719 = vpack.c.b16 %v627, %v623
        %v720 = vpack.c.b16 %v632, %v628
        %v721 = vpack.c.b16 %v633, %v629
        %v722 = vpack.c.b16 %v634, %v630
        %v723 = vpack.c.b16 %v635, %v631
        %v724 = vpack.c.b16 %v640, %v636
        %v725 = vpack.c.b16 %v641, %v637
        %v726 = vpack.c.b16 %v642, %v638
        %v727 = vpack.c.b16 %v643, %v639
        %v728 = vpack.c.b16 %v648, %v644
        %v729 = vpack.c.b16 %v649, %v645
        %v730 = vpack.c.b16 %v650, %v646
        %v731 = vpack.c.b16 %v651, %v647
        %v732 = vpack.c.b16 %v656, %v652
        %v733 = vpack.c.b16 %v657, %v653
        %v734 = vpack.c.b16 %v658, %v654
        %v735 = vpack.c.b16 %v659, %v655
        %v736 = vpack.c.b16 %v664, %v660
        %v737 = vpack.c.b16 %v665, %v661
        %v738 = vpack.c.b16 %v666, %v662
        %v739 = vpack.c.b16 %v667, %v663
        %v740 = vpack.c.b16 %v672, %v668
        %v741 = vpack.c.b16 %v673, %v669
        %v742 = vpack.c.b16 %v674, %v670
        %v743 = vpack.c.b16 %v675, %v671
        %v744 = vpack.c.b16 %v680, %v676
        %v745 = vpack.c.b16 %v681, %v677
        %v746 = vpack.c.b16 %v682, %v678
        %v747 = vpack.c.b16 %v683, %v679
        %812 = vmatprep.subr.bf16.mxu0 %v713
        %813 = vmatpush1.bf16.msra.mxu0 %v712
        %814 = vmatprep.subr.bf16.mxu0 %v709
        %815 = vmatpush1.bf16.msra.mxu0 %v708
        %816 = vmatprep.subr.bf16.mxu0 %v705
        %817 = vmatpush1.bf16.msra.mxu0 %v704
        %818 = vmatprep.subr.bf16.mxu0 %v701
        %819 = vmatpush1.bf16.msra.mxu0 %v700
        %820 = vmatprep.subr.bf16.mxu0 %v697
        %821 = vmatpush1.bf16.msra.mxu0 %v696
        %822 = vmatprep.subr.bf16.mxu0 %v693
        %823 = vmatpush1.bf16.msra.mxu0 %v692
        %824 = vmatprep.subr.bf16.mxu0 %v689
        %825 = vmatpush1.bf16.msra.mxu0 %v688
        %826 = vmatprep.subr.bf16.mxu0 %v685
        %827 = vmatpush1.bf16.msra.mxu0 %v684
        %828 = vmatprep.subr.bf16.mxu0 %v745
        %829 = vmatpush2.bf16.msra.mxu0 %v744
        %830 = vmatprep.subr.bf16.mxu0 %v741
        %831 = vmatpush2.bf16.msra.mxu0 %v740
        %832 = vmatprep.subr.bf16.mxu0 %v737
        %833 = vmatpush2.bf16.msra.mxu0 %v736
        %834 = vmatprep.subr.bf16.mxu0 %v733
        %835 = vmatpush2.bf16.msra.mxu0 %v732
        %836 = vmatprep.subr.bf16.mxu0 %v729
        %837 = vmatpush2.bf16.msra.mxu0 %v728
        %838 = vmatprep.subr.bf16.mxu0 %v725
        %839 = vmatpush2.bf16.msra.mxu0 %v724
        %840 = vmatprep.subr.bf16.mxu0 %v721
        %841 = vmatpush2.bf16.msra.mxu0 %v720
        %842 = vmatprep.subr.bf16.mxu0 %v717
        %843 = vmatpush2.bf16.msra.mxu0 %v716
        %844 = vmatprep.mubr.bf16.mxu0 0
        %845 = vmatmul.mubr.bf16.gmra.mxu0 %v404
        %v846 = vpop.f32.mrf.mxu0
        %v847 = vadd.f32 %v475, %v846
        %v848 = vpop.f32.mrf.mxu0
        %v849 = vadd.f32 %v479, %v848
        %v850 = vpop.f32.mrf.mxu0
        %v851 = vadd.f32 %v475, %v850
        %v852 = vpop.f32.mrf.mxu0
        %v853 = vadd.f32 %v479, %v852
        %854 = vdwg.mxu0
        %855 = vmatprep.subr.bf16.mxu0 %v715
        %856 = vmatpush1.bf16.msra.mxu0 %v714
        %857 = vmatprep.subr.bf16.mxu0 %v711
        %858 = vmatpush1.bf16.msra.mxu0 %v710
        %859 = vmatprep.subr.bf16.mxu0 %v707
        %860 = vmatpush1.bf16.msra.mxu0 %v706
        %861 = vmatprep.subr.bf16.mxu0 %v703
        %862 = vmatpush1.bf16.msra.mxu0 %v702
        %863 = vmatprep.subr.bf16.mxu0 %v699
        %864 = vmatpush1.bf16.msra.mxu0 %v698
        %865 = vmatprep.subr.bf16.mxu0 %v695
        %866 = vmatpush1.bf16.msra.mxu0 %v694
        %867 = vmatprep.subr.bf16.mxu0 %v691
        %868 = vmatpush1.bf16.msra.mxu0 %v690
        %869 = vmatprep.subr.bf16.mxu0 %v687
        %870 = vmatpush1.bf16.msra.mxu0 %v686
        %871 = vmatprep.subr.bf16.mxu0 %v747
        %872 = vmatpush2.bf16.msra.mxu0 %v746
        %873 = vmatprep.subr.bf16.mxu0 %v743
        %874 = vmatpush2.bf16.msra.mxu0 %v742
        %875 = vmatprep.subr.bf16.mxu0 %v739
        %876 = vmatpush2.bf16.msra.mxu0 %v738
        %877 = vmatprep.subr.bf16.mxu0 %v735
        %878 = vmatpush2.bf16.msra.mxu0 %v734
        %879 = vmatprep.subr.bf16.mxu0 %v731
        %880 = vmatpush2.bf16.msra.mxu0 %v730
        %881 = vmatprep.subr.bf16.mxu0 %v727
        %882 = vmatpush2.bf16.msra.mxu0 %v726
        %883 = vmatprep.subr.bf16.mxu0 %v723
        %884 = vmatpush2.bf16.msra.mxu0 %v722
        %885 = vmatprep.subr.bf16.mxu0 %v719
        %886 = vmatpush2.bf16.msra.mxu0 %v718
        %887 = vmatprep.mubr.bf16.mxu0 0
        %888 = vmatmul.mubr.bf16.gmra.mxu0 %v404
        %v889 = vpop.f32.mrf.mxu0
        %v890 = vadd.f32 %v483, %v889
        %v891 = vpop.f32.mrf.mxu0
        %v892 = vadd.f32 %v487, %v891
        %v893 = vpop.f32.mrf.mxu0
        %v894 = vadd.f32 %v483, %v893
        %v895 = vpop.f32.mrf.mxu0
        %v896 = vadd.f32 %v487, %v895
        %897 = vdwg.mxu0
        %v898 = vxor.u32 %v847, 2147483648
        %v899 = vxor.u32 %v851, 2147483648
        %v900 = vmul.f32 %v898, 1.442695
        %v901 = vpow.pop %v900
        %v902 = vmul.f32 %v899, 1.442695
        %v903 = vpow.pop %v902
        %v904 = vadd.f32 %v901, 1.0
        %v905 = vadd.f32 %v903, 1.0
        %v906 = vrcp.pop %v904
        %v907 = vmul.f32 1.0, %v906
        %v908 = vrcp.pop %v905
        %v909 = vmul.f32 1.0, %v908
        %v910 = vxor.u32 %v849, 2147483648
        %v911 = vxor.u32 %v853, 2147483648
        %v912 = vmul.f32 %v910, 1.442695
        %v913 = vpow.pop %v912
        %v914 = vmul.f32 %v911, 1.442695
        %v915 = vpow.pop %v914
        %v916 = vadd.f32 %v913, 1.0
        %v917 = vadd.f32 %v915, 1.0
        %v918 = vrcp.pop %v916
        %v919 = vmul.f32 1.0, %v918
        %v920 = vrcp.pop %v917
        %v921 = vmul.f32 1.0, %v920
        %v922 = vtanh.pop %v890
        %v923 = vtanh.pop %v894
        %v924 = vxor.u32 %v892, 2147483648
        %v925 = vxor.u32 %v896, 2147483648
        %v926 = vmul.f32 %v924, 1.442695
        %v927 = vpow.pop %v926
        %v928 = vmul.f32 %v925, 1.442695
        %v929 = vpow.pop %v928
        %v930 = vadd.f32 %v927, 1.0
        %v931 = vadd.f32 %v929, 1.0
        %v932 = vrcp.pop %v930
        %v933 = vmul.f32 1.0, %v932
        %v934 = vrcp.pop %v931
        %v935 = vmul.f32 1.0, %v934
        %v936 = vmul.f32 %v919, 0.0
        %v937 = vmul.f32 %v921, 0.0
        %v938 = vmul.f32 %v907, %v922
        %v939 = vmul.f32 %v909, %v923
        %v940 = vadd.f32 %v936, %v938
        %v941 = vadd.f32 %v937, %v939
        %v942 = vtanh.pop %v940
        %v943 = vtanh.pop %v941
        %v944 = vmul.f32 %v933, %v942
        %v945 = vmul.f32 %v935, %v943
        %v946 = vld [vmem:[%s394] sm:$0xff]
        %v947 = vld [vmem:[%s394 + $0x8] sm:$0xff]
        %949 = vset.pattern.permute.xlu0 0
        %950 = vperm.xlu0 %949, %v946
        %v951 = vpop.permute.xlu0 %950
        %954 = vset.pattern.permute.xlu0 0
        %955 = vperm.xlu0 %954, %v947
        %v956 = vpop.permute.xlu0 %955
        %v958 = vmul.f32 %v951, %v940
        %v959 = vmul.f32 %v956, %v941
        %v960 = vadd.f32 %v958, 0.0
        %v961 = vadd.f32 %v959, 0.0
        %v962 = vmul.f32 %v951, %v944
        %v963 = vmul.f32 %v956, %v945
        %v964 = vadd.f32 %v962, 0.0
        %v965 = vadd.f32 %v963, 0.0
        %s966 = scalar_lea.vmem %s334, 8 [#allocation2]
        %v967 = vld [vmem:[%s966] sm:$0xf]
        %v968 = vld [vmem:[%s966 + $0x4] sm:$0xf]
        %v969 = vpack.c.bf16 %v965, %v964
        %v972 = vunpack.c.l.b16 %v967
        %v973 = vunpack.c.l.b16 %v968
        %v974 = vpack.c.b16 %v973, %v972
        %976 = vmatprep.subr.bf16.mxu0 %v713
        %977 = vmatpush1.bf16.msra.mxu0 %v712
        %978 = vmatprep.subr.bf16.mxu0 %v709
        %979 = vmatpush1.bf16.msra.mxu0 %v708
        %980 = vmatprep.subr.bf16.mxu0 %v705
        %981 = vmatpush1.bf16.msra.mxu0 %v704
        %982 = vmatprep.subr.bf16.mxu0 %v701
        %983 = vmatpush1.bf16.msra.mxu0 %v700
        %984 = vmatprep.subr.bf16.mxu0 %v697
        %985 = vmatpush1.bf16.msra.mxu0 %v696
        %986 = vmatprep.subr.bf16.mxu0 %v693
        %987 = vmatpush1.bf16.msra.mxu0 %v692
        %988 = vmatprep.subr.bf16.mxu0 %v689
        %989 = vmatpush1.bf16.msra.mxu0 %v688
        %990 = vmatprep.subr.bf16.mxu0 %v685
        %991 = vmatpush1.bf16.msra.mxu0 %v684
        %992 = vmatprep.subr.bf16.mxu0 %v745
        %993 = vmatpush2.bf16.msra.mxu0 %v744
        %994 = vmatprep.subr.bf16.mxu0 %v741
        %995 = vmatpush2.bf16.msra.mxu0 %v740
        %996 = vmatprep.subr.bf16.mxu0 %v737
        %997 = vmatpush2.bf16.msra.mxu0 %v736
        %998 = vmatprep.subr.bf16.mxu0 %v733
        %999 = vmatpush2.bf16.msra.mxu0 %v732
        %1000 = vmatprep.subr.bf16.mxu0 %v729
        %1001 = vmatpush2.bf16.msra.mxu0 %v728
        %1002 = vmatprep.subr.bf16.mxu0 %v725
        %1003 = vmatpush2.bf16.msra.mxu0 %v724
        %1004 = vmatprep.subr.bf16.mxu0 %v721
        %1005 = vmatpush2.bf16.msra.mxu0 %v720
        %1006 = vmatprep.subr.bf16.mxu0 %v717
        %1007 = vmatpush2.bf16.msra.mxu0 %v716
        %1008 = vmatprep.mubr.bf16.mxu0 %v969
        %1009 = vmatmul.mubr.bf16.gmra.mxu0 %v974
        %v1010 = vpop.f32.mrf.mxu0
        %v1011 = vadd.f32 %v475, %v1010
        %v1012 = vpop.f32.mrf.mxu0
        %v1013 = vadd.f32 %v479, %v1012
        %v1014 = vpop.f32.mrf.mxu0
        %v1015 = vadd.f32 %v475, %v1014
        %v1016 = vpop.f32.mrf.mxu0
        %v1017 = vadd.f32 %v479, %v1016
        %1018 = vdwg.mxu0
        %1019 = vmatprep.subr.bf16.mxu0 %v715
        %1020 = vmatpush1.bf16.msra.mxu0 %v714
        %1021 = vmatprep.subr.bf16.mxu0 %v711
        %1022 = vmatpush1.bf16.msra.mxu0 %v710
        %1023 = vmatprep.subr.bf16.mxu0 %v707
        %1024 = vmatpush1.bf16.msra.mxu0 %v706
        %1025 = vmatprep.subr.bf16.mxu0 %v703
        %1026 = vmatpush1.bf16.msra.mxu0 %v702
        %1027 = vmatprep.subr.bf16.mxu0 %v699
        %1028 = vmatpush1.bf16.msra.mxu0 %v698
        %1029 = vmatprep.subr.bf16.mxu0 %v695
        %1030 = vmatpush1.bf16.msra.mxu0 %v694
        %1031 = vmatprep.subr.bf16.mxu0 %v691
        %1032 = vmatpush1.bf16.msra.mxu0 %v690
        %1033 = vmatprep.subr.bf16.mxu0 %v687
        %1034 = vmatpush1.bf16.msra.mxu0 %v686
        %1035 = vmatprep.subr.bf16.mxu0 %v747
        %1036 = vmatpush2.bf16.msra.mxu0 %v746
        %1037 = vmatprep.subr.bf16.mxu0 %v743
        %1038 = vmatpush2.bf16.msra.mxu0 %v742
        %1039 = vmatprep.subr.bf16.mxu0 %v739
        %1040 = vmatpush2.bf16.msra.mxu0 %v738
        %1041 = vmatprep.subr.bf16.mxu0 %v735
        %1042 = vmatpush2.bf16.msra.mxu0 %v734
        %1043 = vmatprep.subr.bf16.mxu0 %v731
        %1044 = vmatpush2.bf16.msra.mxu0 %v730
        %1045 = vmatprep.subr.bf16.mxu0 %v727
        %1046 = vmatpush2.bf16.msra.mxu0 %v726
        %1047 = vmatprep.subr.bf16.mxu0 %v723
        %1048 = vmatpush2.bf16.msra.mxu0 %v722
        %1049 = vmatprep.subr.bf16.mxu0 %v719
        %1050 = vmatpush2.bf16.msra.mxu0 %v718
        %1051 = vmatprep.mubr.bf16.mxu0 %v969
        %1052 = vmatmul.mubr.bf16.gmra.mxu0 %v974
        %v1053 = vpop.f32.mrf.mxu0
        %v1054 = vadd.f32 %v483, %v1053
        %v1055 = vpop.f32.mrf.mxu0
        %v1056 = vadd.f32 %v487, %v1055
        %v1057 = vpop.f32.mrf.mxu0
        %v1058 = vadd.f32 %v483, %v1057
        %v1059 = vpop.f32.mrf.mxu0
        %v1060 = vadd.f32 %v487, %v1059
        %1061 = vdwg.mxu0
        %v1062 = vxor.u32 %v1011, 2147483648
        %v1063 = vxor.u32 %v1015, 2147483648
        %v1064 = vmul.f32 %v1062, 1.442695
        %v1065 = vpow.pop %v1064
        %v1066 = vmul.f32 %v1063, 1.442695
        %v1067 = vpow.pop %v1066
        %v1068 = vadd.f32 %v1065, 1.0
        %v1069 = vadd.f32 %v1067, 1.0
        %v1070 = vrcp.pop %v1068
        %v1071 = vmul.f32 1.0, %v1070
        %v1072 = vrcp.pop %v1069
        %v1073 = vmul.f32 1.0, %v1072
        %v1074 = vxor.u32 %v1013, 2147483648
        %v1075 = vxor.u32 %v1017, 2147483648
        %v1076 = vmul.f32 %v1074, 1.442695
        %v1077 = vpow.pop %v1076
        %v1078 = vmul.f32 %v1075, 1.442695
        %v1079 = vpow.pop %v1078
        %v1080 = vadd.f32 %v1077, 1.0
        %v1081 = vadd.f32 %v1079, 1.0
        %v1082 = vrcp.pop %v1080
        %v1083 = vmul.f32 1.0, %v1082
        %v1084 = vrcp.pop %v1081
        %v1085 = vmul.f32 1.0, %v1084
        %v1086 = vtanh.pop %v1054
        %v1087 = vtanh.pop %v1058
        %v1088 = vxor.u32 %v1056, 2147483648
        %v1089 = vxor.u32 %v1060, 2147483648
        %v1090 = vmul.f32 %v1088, 1.442695
        %v1091 = vpow.pop %v1090
        %v1092 = vmul.f32 %v1089, 1.442695
        %v1093 = vpow.pop %v1092
        %v1094 = vadd.f32 %v1091, 1.0
        %v1095 = vadd.f32 %v1093, 1.0
        %v1096 = vrcp.pop %v1094
        %v1097 = vmul.f32 1.0, %v1096
        %v1098 = vrcp.pop %v1095
        %v1099 = vmul.f32 1.0, %v1098
        %v1100 = vmul.f32 %v1083, %v960
        %v1101 = vmul.f32 %v1085, %v961
        %v1102 = vmul.f32 %v1071, %v1086
        %v1103 = vmul.f32 %v1073, %v1087
        %v1104 = vadd.f32 %v1100, %v1102
        %v1105 = vadd.f32 %v1101, %v1103
        %v1106 = vtanh.pop %v1104
        %v1107 = vtanh.pop %v1105
        %v1108 = vmul.f32 %v1097, %v1106
        %v1109 = vmul.f32 %v1099, %v1107
        %v1110 = vsub.f32 %v1104, %v960
        %v1111 = vsub.f32 %v1105, %v961
        %1112 = vset.pattern.permute.xlu0 1
        %1113 = vperm.xlu0 %1112, %v946
        %v1114 = vpop.permute.xlu0 %1113
        %1116 = vset.pattern.permute.xlu0 1
        %1117 = vperm.xlu0 %1116, %v947
        %v1118 = vpop.permute.xlu0 %1117
        %v1120 = vmul.f32 %v1114, %v1110
        %v1121 = vmul.f32 %v1118, %v1111
        %v1122 = vadd.f32 %v960, %v1120
        %v1123 = vadd.f32 %v961, %v1121
        %v1124 = vsub.f32 %v1108, %v964
        %v1125 = vsub.f32 %v1109, %v965
        %v1126 = vmul.f32 %v1114, %v1124
        %v1127 = vmul.f32 %v1118, %v1125
        %v1128 = vadd.f32 %v964, %v1126
        %v1129 = vadd.f32 %v965, %v1127
        %s1130 = scalar_lea.vmem %s334, 16 [#allocation2]
        %v1131 = vld [vmem:[%s1130] sm:$0xf]
        %v1132 = vld [vmem:[%s1130 + $0x4] sm:$0xf]
        %v1133 = vpack.c.bf16 %v1129, %v1128
        %v1136 = vunpack.c.l.b16 %v1131
        %v1137 = vunpack.c.l.b16 %v1132
        %v1138 = vpack.c.b16 %v1137, %v1136
        %1140 = vmatprep.subr.bf16.mxu0 %v713
        %1141 = vmatpush1.bf16.msra.mxu0 %v712
        %1142 = vmatprep.subr.bf16.mxu0 %v709
        %1143 = vmatpush1.bf16.msra.mxu0 %v708
        %1144 = vmatprep.subr.bf16.mxu0 %v705
        %1145 = vmatpush1.bf16.msra.mxu0 %v704
        %1146 = vmatprep.subr.bf16.mxu0 %v701
        %1147 = vmatpush1.bf16.msra.mxu0 %v700
        %1148 = vmatprep.subr.bf16.mxu0 %v697
        %1149 = vmatpush1.bf16.msra.mxu0 %v696
        %1150 = vmatprep.subr.bf16.mxu0 %v693
        %1151 = vmatpush1.bf16.msra.mxu0 %v692
        %1152 = vmatprep.subr.bf16.mxu0 %v689
        %1153 = vmatpush1.bf16.msra.mxu0 %v688
        %1154 = vmatprep.subr.bf16.mxu0 %v685
        %1155 = vmatpush1.bf16.msra.mxu0 %v684
        %1156 = vmatprep.subr.bf16.mxu0 %v745
        %1157 = vmatpush2.bf16.msra.mxu0 %v744
        %1158 = vmatprep.subr.bf16.mxu0 %v741
        %1159 = vmatpush2.bf16.msra.mxu0 %v740
        %1160 = vmatprep.subr.bf16.mxu0 %v737
        %1161 = vmatpush2.bf16.msra.mxu0 %v736
        %1162 = vmatprep.subr.bf16.mxu0 %v733
        %1163 = vmatpush2.bf16.msra.mxu0 %v732
        %1164 = vmatprep.subr.bf16.mxu0 %v729
        %1165 = vmatpush2.bf16.msra.mxu0 %v728
        %1166 = vmatprep.subr.bf16.mxu0 %v725
        %1167 = vmatpush2.bf16.msra.mxu0 %v724
        %1168 = vmatprep.subr.bf16.mxu0 %v721
        %1169 = vmatpush2.bf16.msra.mxu0 %v720
        %1170 = vmatprep.subr.bf16.mxu0 %v717
        %1171 = vmatpush2.bf16.msra.mxu0 %v716
        %1172 = vmatprep.mubr.bf16.mxu0 %v1133
        %1173 = vmatmul.mubr.bf16.gmra.mxu0 %v1138
        %v1174 = vpop.f32.mrf.mxu0
        %v1175 = vadd.f32 %v475, %v1174
        %v1176 = vpop.f32.mrf.mxu0
        %v1177 = vadd.f32 %v479, %v1176
        %v1178 = vpop.f32.mrf.mxu0
        %v1179 = vadd.f32 %v475, %v1178
        %v1180 = vpop.f32.mrf.mxu0
        %v1181 = vadd.f32 %v479, %v1180
        %1182 = vdwg.mxu0
        %1183 = vmatprep.subr.bf16.mxu0 %v715
        %1184 = vmatpush1.bf16.msra.mxu0 %v714
        %1185 = vmatprep.subr.bf16.mxu0 %v711
        %1186 = vmatpush1.bf16.msra.mxu0 %v710
        %1187 = vmatprep.subr.bf16.mxu0 %v707
        %1188 = vmatpush1.bf16.msra.mxu0 %v706
        %1189 = vmatprep.subr.bf16.mxu0 %v703
        %1190 = vmatpush1.bf16.msra.mxu0 %v702
        %1191 = vmatprep.subr.bf16.mxu0 %v699
        %1192 = vmatpush1.bf16.msra.mxu0 %v698
        %1193 = vmatprep.subr.bf16.mxu0 %v695
        %1194 = vmatpush1.bf16.msra.mxu0 %v694
        %1195 = vmatprep.subr.bf16.mxu0 %v691
        %1196 = vmatpush1.bf16.msra.mxu0 %v690
        %1197 = vmatprep.subr.bf16.mxu0 %v687
        %1198 = vmatpush1.bf16.msra.mxu0 %v686
        %1199 = vmatprep.subr.bf16.mxu0 %v747
        %1200 = vmatpush2.bf16.msra.mxu0 %v746
        %1201 = vmatprep.subr.bf16.mxu0 %v743
        %1202 = vmatpush2.bf16.msra.mxu0 %v742
        %1203 = vmatprep.subr.bf16.mxu0 %v739
        %1204 = vmatpush2.bf16.msra.mxu0 %v738
        %1205 = vmatprep.subr.bf16.mxu0 %v735
        %1206 = vmatpush2.bf16.msra.mxu0 %v734
        %1207 = vmatprep.subr.bf16.mxu0 %v731
        %1208 = vmatpush2.bf16.msra.mxu0 %v730
        %1209 = vmatprep.subr.bf16.mxu0 %v727
        %1210 = vmatpush2.bf16.msra.mxu0 %v726
        %1211 = vmatprep.subr.bf16.mxu0 %v723
        %1212 = vmatpush2.bf16.msra.mxu0 %v722
        %1213 = vmatprep.subr.bf16.mxu0 %v719
        %1214 = vmatpush2.bf16.msra.mxu0 %v718
        %1215 = vmatprep.mubr.bf16.mxu0 %v1133
        %1216 = vmatmul.mubr.bf16.gmra.mxu0 %v1138
        %v1217 = vpop.f32.mrf.mxu0
        %v1218 = vadd.f32 %v483, %v1217
        %v1219 = vpop.f32.mrf.mxu0
        %v1220 = vadd.f32 %v487, %v1219
        %v1221 = vpop.f32.mrf.mxu0
        %v1222 = vadd.f32 %v483, %v1221
        %v1223 = vpop.f32.mrf.mxu0
        %v1224 = vadd.f32 %v487, %v1223
        %1225 = vdwg.mxu0
        %v1226 = vxor.u32 %v1175, 2147483648
        %v1227 = vxor.u32 %v1179, 2147483648
        %v1228 = vmul.f32 %v1226, 1.442695
        %v1229 = vpow.pop %v1228
        %v1230 = vmul.f32 %v1227, 1.442695
        %v1231 = vpow.pop %v1230
        %v1232 = vadd.f32 %v1229, 1.0
        %v1233 = vadd.f32 %v1231, 1.0
        %v1234 = vrcp.pop %v1232
        %v1235 = vmul.f32 1.0, %v1234
        %v1236 = vrcp.pop %v1233
        %v1237 = vmul.f32 1.0, %v1236
        %v1238 = vxor.u32 %v1177, 2147483648
        %v1239 = vxor.u32 %v1181, 2147483648
        %v1240 = vmul.f32 %v1238, 1.442695
        %v1241 = vpow.pop %v1240
        %v1242 = vmul.f32 %v1239, 1.442695
        %v1243 = vpow.pop %v1242
        %v1244 = vadd.f32 %v1241, 1.0
        %v1245 = vadd.f32 %v1243, 1.0
        %v1246 = vrcp.pop %v1244
        %v1247 = vmul.f32 1.0, %v1246
        %v1248 = vrcp.pop %v1245
        %v1249 = vmul.f32 1.0, %v1248
        %v1250 = vtanh.pop %v1218
        %v1251 = vtanh.pop %v1222
        %v1252 = vxor.u32 %v1220, 2147483648
        %v1253 = vxor.u32 %v1224, 2147483648
        %v1254 = vmul.f32 %v1252, 1.442695
        %v1255 = vpow.pop %v1254
        %v1256 = vmul.f32 %v1253, 1.442695
        %v1257 = vpow.pop %v1256
        %v1258 = vadd.f32 %v1255, 1.0
        %v1259 = vadd.f32 %v1257, 1.0
        %v1260 = vrcp.pop %v1258
        %v1261 = vmul.f32 1.0, %v1260
        %v1262 = vrcp.pop %v1259
        %v1263 = vmul.f32 1.0, %v1262
        %v1264 = vmul.f32 %v1247, %v1122
        %v1265 = vmul.f32 %v1249, %v1123
        %v1266 = vmul.f32 %v1235, %v1250
        %v1267 = vmul.f32 %v1237, %v1251
        %v1268 = vadd.f32 %v1264, %v1266
        %v1269 = vadd.f32 %v1265, %v1267
        %v1270 = vtanh.pop %v1268
        %v1271 = vtanh.pop %v1269
        %v1272 = vmul.f32 %v1261, %v1270
        %v1273 = vmul.f32 %v1263, %v1271
        %v1274 = vsub.f32 %v1268, %v1122
        %v1275 = vsub.f32 %v1269, %v1123
        %1276 = vset.pattern.permute.xlu0 2
        %1277 = vperm.xlu0 %1276, %v946
        %v1278 = vpop.permute.xlu0 %1277
        %1280 = vset.pattern.permute.xlu0 2
        %1281 = vperm.xlu0 %1280, %v947
        %v1282 = vpop.permute.xlu0 %1281
        %v1284 = vmul.f32 %v1278, %v1274
        %v1285 = vmul.f32 %v1282, %v1275
        %v1286 = vadd.f32 %v1122, %v1284
        %v1287 = vadd.f32 %v1123, %v1285
        %v1288 = vsub.f32 %v1272, %v1128
        %v1289 = vsub.f32 %v1273, %v1129
        %v1290 = vmul.f32 %v1278, %v1288
        %v1291 = vmul.f32 %v1282, %v1289
        %v1292 = vadd.f32 %v1128, %v1290
        %v1293 = vadd.f32 %v1129, %v1291
        %s1294 = scalar_lea.vmem %s334, 24 [#allocation2]
        %v1295 = vld [vmem:[%s1294] sm:$0xf]
        %v1296 = vld [vmem:[%s1294 + $0x4] sm:$0xf]
        %v1297 = vpack.c.bf16 %v1293, %v1292
        %v1300 = vunpack.c.l.b16 %v1295
        %v1301 = vunpack.c.l.b16 %v1296
        %v1302 = vpack.c.b16 %v1301, %v1300
        %1304 = vmatprep.subr.bf16.mxu0 %v713
        %1305 = vmatpush1.bf16.msra.mxu0 %v712
        %1306 = vmatprep.subr.bf16.mxu0 %v709
        %1307 = vmatpush1.bf16.msra.mxu0 %v708
        %1308 = vmatprep.subr.bf16.mxu0 %v705
        %1309 = vmatpush1.bf16.msra.mxu0 %v704
        %1310 = vmatprep.subr.bf16.mxu0 %v701
        %1311 = vmatpush1.bf16.msra.mxu0 %v700
        %1312 = vmatprep.subr.bf16.mxu0 %v697
        %1313 = vmatpush1.bf16.msra.mxu0 %v696
        %1314 = vmatprep.subr.bf16.mxu0 %v693
        %1315 = vmatpush1.bf16.msra.mxu0 %v692
        %1316 = vmatprep.subr.bf16.mxu0 %v689
        %1317 = vmatpush1.bf16.msra.mxu0 %v688
        %1318 = vmatprep.subr.bf16.mxu0 %v685
        %1319 = vmatpush1.bf16.msra.mxu0 %v684
        %1320 = vmatprep.subr.bf16.mxu0 %v745
        %1321 = vmatpush2.bf16.msra.mxu0 %v744
        %1322 = vmatprep.subr.bf16.mxu0 %v741
        %1323 = vmatpush2.bf16.msra.mxu0 %v740
        %1324 = vmatprep.subr.bf16.mxu0 %v737
        %1325 = vmatpush2.bf16.msra.mxu0 %v736
        %1326 = vmatprep.subr.bf16.mxu0 %v733
        %1327 = vmatpush2.bf16.msra.mxu0 %v732
        %1328 = vmatprep.subr.bf16.mxu0 %v729
        %1329 = vmatpush2.bf16.msra.mxu0 %v728
        %1330 = vmatprep.subr.bf16.mxu0 %v725
        %1331 = vmatpush2.bf16.msra.mxu0 %v724
        %1332 = vmatprep.subr.bf16.mxu0 %v721
        %1333 = vmatpush2.bf16.msra.mxu0 %v720
        %1334 = vmatprep.subr.bf16.mxu0 %v717
        %1335 = vmatpush2.bf16.msra.mxu0 %v716
        %1336 = vmatprep.mubr.bf16.mxu0 %v1297
        %1337 = vmatmul.mubr.bf16.gmra.mxu0 %v1302
        %v1338 = vpop.f32.mrf.mxu0
        %v1339 = vadd.f32 %v475, %v1338
        %v1340 = vpop.f32.mrf.mxu0
        %v1341 = vadd.f32 %v479, %v1340
        %v1342 = vpop.f32.mrf.mxu0
        %v1343 = vadd.f32 %v475, %v1342
        %v1344 = vpop.f32.mrf.mxu0
        %v1345 = vadd.f32 %v479, %v1344
        %1346 = vdwg.mxu0
        %1347 = vmatprep.subr.bf16.mxu0 %v715
        %1348 = vmatpush1.bf16.msra.mxu0 %v714
        %1349 = vmatprep.subr.bf16.mxu0 %v711
        %1350 = vmatpush1.bf16.msra.mxu0 %v710
        %1351 = vmatprep.subr.bf16.mxu0 %v707
        %1352 = vmatpush1.bf16.msra.mxu0 %v706
        %1353 = vmatprep.subr.bf16.mxu0 %v703
        %1354 = vmatpush1.bf16.msra.mxu0 %v702
        %1355 = vmatprep.subr.bf16.mxu0 %v699
        %1356 = vmatpush1.bf16.msra.mxu0 %v698
        %1357 = vmatprep.subr.bf16.mxu0 %v695
        %1358 = vmatpush1.bf16.msra.mxu0 %v694
        %1359 = vmatprep.subr.bf16.mxu0 %v691
        %1360 = vmatpush1.bf16.msra.mxu0 %v690
        %1361 = vmatprep.subr.bf16.mxu0 %v687
        %1362 = vmatpush1.bf16.msra.mxu0 %v686
        %1363 = vmatprep.subr.bf16.mxu0 %v747
        %1364 = vmatpush2.bf16.msra.mxu0 %v746
        %1365 = vmatprep.subr.bf16.mxu0 %v743
        %1366 = vmatpush2.bf16.msra.mxu0 %v742
        %1367 = vmatprep.subr.bf16.mxu0 %v739
        %1368 = vmatpush2.bf16.msra.mxu0 %v738
        %1369 = vmatprep.subr.bf16.mxu0 %v735
        %1370 = vmatpush2.bf16.msra.mxu0 %v734
        %1371 = vmatprep.subr.bf16.mxu0 %v731
        %1372 = vmatpush2.bf16.msra.mxu0 %v730
        %1373 = vmatprep.subr.bf16.mxu0 %v727
        %1374 = vmatpush2.bf16.msra.mxu0 %v726
        %1375 = vmatprep.subr.bf16.mxu0 %v723
        %1376 = vmatpush2.bf16.msra.mxu0 %v722
        %1377 = vmatprep.subr.bf16.mxu0 %v719
        %1378 = vmatpush2.bf16.msra.mxu0 %v718
        %1379 = vmatprep.mubr.bf16.mxu0 %v1297
        %1380 = vmatmul.mubr.bf16.gmra.mxu0 %v1302
        %v1381 = vpop.f32.mrf.mxu0
        %v1382 = vadd.f32 %v483, %v1381
        %v1383 = vpop.f32.mrf.mxu0
        %v1384 = vadd.f32 %v487, %v1383
        %v1385 = vpop.f32.mrf.mxu0
        %v1386 = vadd.f32 %v483, %v1385
        %v1387 = vpop.f32.mrf.mxu0
        %v1388 = vadd.f32 %v487, %v1387
        %1389 = vdwg.mxu0
        %v1390 = vxor.u32 %v1339, 2147483648
        %v1391 = vxor.u32 %v1343, 2147483648
        %v1392 = vmul.f32 %v1390, 1.442695
        %v1393 = vpow.pop %v1392
        %v1394 = vmul.f32 %v1391, 1.442695
        %v1395 = vpow.pop %v1394
        %v1396 = vadd.f32 %v1393, 1.0
        %v1397 = vadd.f32 %v1395, 1.0
        %v1398 = vrcp.pop %v1396
        %v1399 = vmul.f32 1.0, %v1398
        %v1400 = vrcp.pop %v1397
        %v1401 = vmul.f32 1.0, %v1400
        %v1402 = vxor.u32 %v1341, 2147483648
        %v1403 = vxor.u32 %v1345, 2147483648
        %v1404 = vmul.f32 %v1402, 1.442695
        %v1405 = vpow.pop %v1404
        %v1406 = vmul.f32 %v1403, 1.442695
        %v1407 = vpow.pop %v1406
        %v1408 = vadd.f32 %v1405, 1.0
        %v1409 = vadd.f32 %v1407, 1.0
        %v1410 = vrcp.pop %v1408
        %v1411 = vmul.f32 1.0, %v1410
        %v1412 = vrcp.pop %v1409
        %v1413 = vmul.f32 1.0, %v1412
        %v1414 = vtanh.pop %v1382
        %v1415 = vtanh.pop %v1386
        %v1416 = vxor.u32 %v1384, 2147483648
        %v1417 = vxor.u32 %v1388, 2147483648
        %v1418 = vmul.f32 %v1416, 1.442695
        %v1419 = vpow.pop %v1418
        %v1420 = vmul.f32 %v1417, 1.442695
        %v1421 = vpow.pop %v1420
        %v1422 = vadd.f32 %v1419, 1.0
        %v1423 = vadd.f32 %v1421, 1.0
        %v1424 = vrcp.pop %v1422
        %v1425 = vmul.f32 1.0, %v1424
        %v1426 = vrcp.pop %v1423
        %v1427 = vmul.f32 1.0, %v1426
        %v1428 = vmul.f32 %v1411, %v1286
        %v1429 = vmul.f32 %v1413, %v1287
        %v1430 = vmul.f32 %v1399, %v1414
        %v1431 = vmul.f32 %v1401, %v1415
        %v1432 = vadd.f32 %v1428, %v1430
        %v1433 = vadd.f32 %v1429, %v1431
        %v1434 = vtanh.pop %v1432
        %v1435 = vtanh.pop %v1433
        %v1436 = vmul.f32 %v1425, %v1434
        %v1437 = vmul.f32 %v1427, %v1435
        %v1438 = vsub.f32 %v1436, %v1292
        %v1439 = vsub.f32 %v1437, %v1293
        %1440 = vset.pattern.permute.xlu0 3
        %1441 = vperm.xlu0 %1440, %v946
        %v1442 = vpop.permute.xlu0 %1441
        %1444 = vset.pattern.permute.xlu0 3
        %1445 = vperm.xlu0 %1444, %v947
        %v1446 = vpop.permute.xlu0 %1445
        %v1448 = vmul.f32 %v1442, %v1438
        %v1449 = vmul.f32 %v1446, %v1439
        %v1450 = vadd.f32 %v1292, %v1448
        %v1451 = vadd.f32 %v1293, %v1449
        %v1452 = vld [vmem:[%s387] sm:$0xf]
        %v1453 = vld [vmem:[%s387 + $0x4] sm:$0xf]
        %v1454 = vpack.c.bf16 %v1451, %v1450
        %v1457 = vunpack.c.l.b16 %v1452
        %v1458 = vunpack.c.l.b16 %v1453
        %v1459 = vpack.c.b16 %v1458, %v1457
        %v1461 = vld [vmem:[#allocation7] sm:$0xf]
        %v1462 = vld [vmem:[#allocation7 + $0x4] sm:$0xf]
        %v1463 = vld [vmem:[#allocation7 + $0x8] sm:$0xf]
        %v1464 = vld [vmem:[#allocation7 + $0xc] sm:$0xf]
        %v1465 = vld [vmem:[#allocation7 + $0x10] sm:$0xf]
        %v1466 = vld [vmem:[#allocation7 + $0x14] sm:$0xf]
        %v1467 = vld [vmem:[#allocation7 + $0x18] sm:$0xf]
        %v1468 = vld [vmem:[#allocation7 + $0x1c] sm:$0xf]
        %v1469 = vld [vmem:[#allocation7 + $0x20] sm:$0xf]
        %v1470 = vld [vmem:[#allocation7 + $0x24] sm:$0xf]
        %v1471 = vld [vmem:[#allocation7 + $0x28] sm:$0xf]
        %v1472 = vld [vmem:[#allocation7 + $0x2c] sm:$0xf]
        %v1473 = vld [vmem:[#allocation7 + $0x30] sm:$0xf]
        %v1474 = vld [vmem:[#allocation7 + $0x34] sm:$0xf]
        %v1475 = vld [vmem:[#allocation7 + $0x38] sm:$0xf]
        %v1476 = vld [vmem:[#allocation7 + $0x3c] sm:$0xf]
        %v1477 = vld [vmem:[#allocation7 + $0x40] sm:$0xf]
        %v1478 = vld [vmem:[#allocation7 + $0x44] sm:$0xf]
        %v1479 = vld [vmem:[#allocation7 + $0x48] sm:$0xf]
        %v1480 = vld [vmem:[#allocation7 + $0x4c] sm:$0xf]
        %v1481 = vld [vmem:[#allocation7 + $0x50] sm:$0xf]
        %v1482 = vld [vmem:[#allocation7 + $0x54] sm:$0xf]
        %v1483 = vld [vmem:[#allocation7 + $0x58] sm:$0xf]
        %v1484 = vld [vmem:[#allocation7 + $0x5c] sm:$0xf]
        %v1485 = vld [vmem:[#allocation7 + $0x60] sm:$0xf]
        %v1486 = vld [vmem:[#allocation7 + $0x64] sm:$0xf]
        %v1487 = vld [vmem:[#allocation7 + $0x68] sm:$0xf]
        %v1488 = vld [vmem:[#allocation7 + $0x6c] sm:$0xf]
        %v1489 = vld [vmem:[#allocation7 + $0x70] sm:$0xf]
        %v1490 = vld [vmem:[#allocation7 + $0x74] sm:$0xf]
        %v1491 = vld [vmem:[#allocation7 + $0x78] sm:$0xf]
        %v1492 = vld [vmem:[#allocation7 + $0x7c] sm:$0xf]
        %v1493 = vld [vmem:[%s6] sm:$0x1]
        %v1495 = vlaneseq
        %v1496 = vshrl.u32 %v1495, 7
        %v1497 = vsub.s32 0, %v1496
        %v1498 = vrot.slane %v1493, %v1497
        %v1532 = vunpack.c.l.b16 %v1461
        %v1533 = vunpack.c.l.b16 %v1462
        %v1534 = vunpack.c.l.b16 %v1463
        %v1535 = vunpack.c.l.b16 %v1464
        %v1536 = vunpack.c.l.b16 %v1465
        %v1537 = vunpack.c.l.b16 %v1466
        %v1538 = vunpack.c.l.b16 %v1467
        %v1539 = vunpack.c.l.b16 %v1468
        %v1540 = vunpack.c.l.b16 %v1469
        %v1541 = vunpack.c.l.b16 %v1470
        %v1542 = vunpack.c.l.b16 %v1471
        %v1543 = vunpack.c.l.b16 %v1472
        %v1544 = vunpack.c.l.b16 %v1473
        %v1545 = vunpack.c.l.b16 %v1474
        %v1546 = vunpack.c.l.b16 %v1475
        %v1547 = vunpack.c.l.b16 %v1476
        %v1548 = vunpack.c.l.b16 %v1477
        %v1549 = vunpack.c.l.b16 %v1478
        %v1550 = vunpack.c.l.b16 %v1479
        %v1551 = vunpack.c.l.b16 %v1480
        %v1552 = vunpack.c.l.b16 %v1481
        %v1553 = vunpack.c.l.b16 %v1482
        %v1554 = vunpack.c.l.b16 %v1483
        %v1555 = vunpack.c.l.b16 %v1484
        %v1556 = vunpack.c.l.b16 %v1485
        %v1557 = vunpack.c.l.b16 %v1486
        %v1558 = vunpack.c.l.b16 %v1487
        %v1559 = vunpack.c.l.b16 %v1488
        %v1560 = vunpack.c.l.b16 %v1489
        %v1561 = vunpack.c.l.b16 %v1490
        %v1562 = vunpack.c.l.b16 %v1491
        %v1563 = vunpack.c.l.b16 %v1492
        %v1564 = vpack.c.b16 %v1533, %v1532
        %v1565 = vpack.c.b16 %v1535, %v1534
        %v1566 = vpack.c.b16 %v1537, %v1536
        %v1567 = vpack.c.b16 %v1539, %v1538
        %v1568 = vpack.c.b16 %v1541, %v1540
        %v1569 = vpack.c.b16 %v1543, %v1542
        %v1570 = vpack.c.b16 %v1545, %v1544
        %v1571 = vpack.c.b16 %v1547, %v1546
        %v1572 = vpack.c.b16 %v1549, %v1548
        %v1573 = vpack.c.b16 %v1551, %v1550
        %v1574 = vpack.c.b16 %v1553, %v1552
        %v1575 = vpack.c.b16 %v1555, %v1554
        %v1576 = vpack.c.b16 %v1557, %v1556
        %v1577 = vpack.c.b16 %v1559, %v1558
        %v1578 = vpack.c.b16 %v1561, %v1560
        %v1579 = vpack.c.b16 %v1563, %v1562
        %1596 = vmatprep.subr.bf16.mxu0 0
        %1597 = vmatpush1.bf16.msra.mxu0 %v1571
        %1598 = vmatprep.subr.bf16.mxu0 0
        %1599 = vmatpush1.bf16.msra.mxu0 %v1570
        %1600 = vmatprep.subr.bf16.mxu0 0
        %1601 = vmatpush1.bf16.msra.mxu0 %v1569
        %1602 = vmatprep.subr.bf16.mxu0 0
        %1603 = vmatpush1.bf16.msra.mxu0 %v1568
        %1604 = vmatprep.subr.bf16.mxu0 0
        %1605 = vmatpush1.bf16.msra.mxu0 %v1567
        %1606 = vmatprep.subr.bf16.mxu0 0
        %1607 = vmatpush1.bf16.msra.mxu0 %v1566
        %1608 = vmatprep.subr.bf16.mxu0 0
        %1609 = vmatpush1.bf16.msra.mxu0 %v1565
        %1610 = vmatprep.subr.bf16.mxu0 0
        %1611 = vmatpush1.bf16.msra.mxu0 %v1564
        %1612 = vmatprep.subr.bf16.mxu0 0
        %1613 = vmatpush2.bf16.msra.mxu0 %v1579
        %1614 = vmatprep.subr.bf16.mxu0 0
        %1615 = vmatpush2.bf16.msra.mxu0 %v1578
        %1616 = vmatprep.subr.bf16.mxu0 0
        %1617 = vmatpush2.bf16.msra.mxu0 %v1577
        %1618 = vmatprep.subr.bf16.mxu0 0
        %1619 = vmatpush2.bf16.msra.mxu0 %v1576
        %1620 = vmatprep.subr.bf16.mxu0 0
        %1621 = vmatpush2.bf16.msra.mxu0 %v1575
        %1622 = vmatprep.subr.bf16.mxu0 0
        %1623 = vmatpush2.bf16.msra.mxu0 %v1574
        %1624 = vmatprep.subr.bf16.mxu0 0
        %1625 = vmatpush2.bf16.msra.mxu0 %v1573
        %1626 = vmatprep.subr.bf16.mxu0 0
        %1627 = vmatpush2.bf16.msra.mxu0 %v1572
        %1628 = vmatprep.mubr.bf16.mxu0 %v1454
        %1629 = vmatmul.mubr.bf16.gmra.mxu0 %v1459
        %v1630 = vpop.f32.mrf.mxu0
        %v1631 = vadd.f32 %v1498, %v1630
        %v1632 = vpop.f32.mrf.mxu0
        %v1633 = vpop.f32.mrf.mxu0
        %v1634 = vadd.f32 %v1498, %v1633
        %v1635 = vpop.f32.mrf.mxu0
        %1636 = vdwg.mxu0
        %v1637 = vmax.f32 %v1631, 0.0
        %v1638 = vmax.f32 %v1634, 0.0
        %v1639 = vpack.c.bf16 %v1638, %v1637
        %v1641 = vunpack.c.l.b16 %v1639
        %v1642 = vunpack.c.h.b16 %v1639
        %v1643 = vpack.c.b16 %v1641, %v1641
        %v1644 = vpack.c.b16 %v1642, %v1642
        %1647 = vst [vmem:[%s382] sm:$0xf] %v1643
        %1648 = vst [vmem:[%s382 + $0x4] sm:$0xf] %v1644
        %s1649 = sand.u32 %s195, 1
        %s1650 = scalar_lea.sflag [#allocation4], %s1649
        %s1651 = sand.u32 %s195, 1
        %s1652 = smul.addr %s1651, 8
        %s1653 = scalar_lea.vmem [#allocation8], %s1652
        // Predicated region
        $region61: #{tpu_custom_call.1} parent=47 // pred_check
          %p1654 = pneg %p205
        $region62: #{tpu_custom_call.1} parent=47 // pred_check_branch
          %1656 = sbr.rel (%p1654) target = $region64
        $region63: #{tpu_custom_call.1} parent=47 // pred_region
          %s1657 = smul.u32 2, %s25
          %s1659 = ssub.s32 128, 128
          %1660 = vsyncadd %s1650, %s1659
          %s1661 = smul.addr %s1657, 64
          %s1662 = scalar_lea.hbm %s7, %s1661
          %s1663 = sshll.u32 %s1653, 4
          %s1664 = int_to_ptr.vmem [resolvable:$true] %s1663
          %1669 = dma.vmem_to_hbm [thread:$0]  %s1664, 128, %s1662, %s1650, 64, 64, 4
        $region64: #{tpu_custom_call.1} parent=47 // pred_fallthru
          _
      $region48: #{tpu_custom_call.1} parent=5 // pred_fallthru
        _
      %p1670 = scmp.le.s32.totalorder 2, %s20
      // Predicated region
      $region65: #{tpu_custom_call.1} parent=5 // pred_check
        %p1671 = pneg %p1670
      $region66: #{tpu_custom_call.1} parent=5 // pred_check_branch
        %1673 = sbr.rel (%p1671) target = $region68
      $region67: #{tpu_custom_call.1} parent=5 // pred_region
        %s1674 = ssub.s32 %s20, 2
        // Predicated region
        $region69: #{tpu_custom_call.1} parent=67 // pred_check
          %p1675 = pneg %p211
        $region70: #{tpu_custom_call.1} parent=67 // pred_check_branch
          %1677 = sbr.rel (%p1675) target = $region72
        $region71: #{tpu_custom_call.1} parent=67 // pred_region
          %s1678 = sand.u32 %s196, 1
          %s1679 = scalar_lea.sflag [#allocation4], %s1678
          %s1680 = sand.u32 %s196, 1
          %s1681 = smul.addr %s1680, 8
          %s1682 = scalar_lea.vmem [#allocation8], %s1681
          %1683 = dma.done %s1679, 128
        $region72: #{tpu_custom_call.1} parent=67 // pred_fallthru
          _
      $region68: #{tpu_custom_call.1} parent=5 // pred_fallthru
        _
    $region6: #{tpu_custom_call.1} parent=1 // loop_footer
      %s24 = sadd.s32 1, %s20
    $region7: #{tpu_custom_call.1} parent=1 // loop_footer_branch
      %19 = sbr.rel target = $region3
    $region8: #{tpu_custom_call.1} parent=1 // loop_exit
      _
    %1684 = vsyncpa [#allocation3], 1
    %s1685 = scalar_lea.sflag [#allocation3], 1
    %1686 = vsyncpa %s1685, 1
    %1687 = vsyncpa [#allocation6], 1
    %1688 = vsyncpa [#allocation4], 1
    %s1689 = scalar_lea.sflag [#allocation4], 1
    %1690 = vsyncpa %s1689, 1

</llo_original>
